<compile_context>
chip_gen: v5e
topology: v5e:2x2
jax: 0.10.0
libtpu: 0.0.40
codegen_flags: <defaults>
</compile_context>

<pallas_src>
import jax
import jax.numpy as jnp
from jax.experimental import pallas as pl
from jax.experimental.pallas import tpu as pltpu

# TODO(synk): ACTION_DELTAS is not shown in the source snippet; a 2-D push env
# conventionally has 4 move deltas, so NUM_ACTIONS is derived from that here.
ACTION_DELTAS = [(-1, 0), (1, 0), (0, -1), (0, 1)]
NUM_ACTIONS = len(ACTION_DELTAS)

OBS_SIZE = 4
HIDDEN = 64

# Max rows per grid step (multiple of 8).  At 8192 the streamed x+out
# double-buffers cost 4 * 8192 * 512 B = 16 MiB of VMEM (last dim lane-pads
# to 128), well under every generation's physical VMEM.
TILE_B_MAX = 8192

# Below this batch size, skip Pallas entirely (launch overhead dominates).
MIN_PALLAS_BATCH = 512

_VMEM_LIMIT_BYTES = 48 * 1024 * 1024  # > v5e's 16 MiB scoped default, < v7x's 64 MiB physical


def qnet_kernel(x_ref, w1_ref, b1_ref, w2_ref, b2_ref, w3_ref, b3_ref, o_ref):
    # Whole 3-layer MLP fused in VMEM: three bf16 MXU matmuls with f32
    # accumulation; bias-add and tanh in f32 (v5e has no bf16 VPU/EUP).
    x = x_ref[...].astype(jnp.bfloat16)
    h1 = jnp.tanh(
        jnp.dot(x, w1_ref[...], preferred_element_type=jnp.float32) + b1_ref[...]
    )
    h2 = jnp.tanh(
        jnp.dot(h1.astype(jnp.bfloat16), w2_ref[...],
                preferred_element_type=jnp.float32) + b2_ref[...]
    )
    o_ref[...] = (
        jnp.dot(h2.astype(jnp.bfloat16), w3_ref[...],
                preferred_element_type=jnp.float32) + b3_ref[...]
    ).astype(o_ref.dtype)


def _round_up(n, m):
    return ((n + m - 1) // m) * m


def _qnet_jnp(x, params):
    """Pure-jnp forward with identical numerics (bf16 operands, f32 accum)."""
    h1 = jnp.tanh(
        jnp.dot(x.astype(jnp.bfloat16), params["w1"],
                preferred_element_type=jnp.float32) + params["b1"]
    )
    h2 = jnp.tanh(
        jnp.dot(h1.astype(jnp.bfloat16), params["w2"],
                preferred_element_type=jnp.float32) + params["b2"]
    )
    return (
        jnp.dot(h2.astype(jnp.bfloat16), params["w3"],
                preferred_element_type=jnp.float32) + params["b3"]
    )


def qnet_forward(x, params):
    """x: (B, OBS_SIZE) float32 -> (B, NUM_ACTIONS) float32."""
    B = x.shape[0]

    # Small-batch fallback: at rollout sizes the pallas_call launch + a single
    # tiny grid step is pure overhead; XLA's fused GEMM path wins there.
    if B < MIN_PALLAS_BATCH:
        return _qnet_jnp(x, params)

    # Adaptive tile: at least 2 grid steps (so v7x megacore shards the batch
    # axis), tile capped at TILE_B_MAX, padding limited to < tile_b rows and
    # in practice to a handful of rows.
    n_steps = max(2, pl.cdiv(B, TILE_B_MAX))
    tile_b = _round_up(pl.cdiv(B, n_steps), 8)
    padded_b = _round_up(B, tile_b)
    if padded_b != B:
        x = jnp.pad(x, ((0, padded_b - B), (0, 0)))

    grid = (padded_b // tile_b,)

    # x / out tiles stream over the batch grid (double-buffered); weights and
    # biases use a constant block index -> DMA'd once, resident all steps.
    x_spec = pl.BlockSpec((tile_b, OBS_SIZE), lambda i: (i, 0))
    out_spec = pl.BlockSpec((tile_b, NUM_ACTIONS), lambda i: (i, 0))

    def resident(shape):
        return pl.BlockSpec(shape, lambda i: (0, 0))

    out = pl.pallas_call(
        qnet_kernel,
        out_shape=jax.ShapeDtypeStruct((padded_b, NUM_ACTIONS), jnp.float32),
        grid=grid,
        in_specs=[
            x_spec,
            resident((OBS_SIZE, HIDDEN)), resident((1, HIDDEN)),
            resident((HIDDEN, HIDDEN)), resident((1, HIDDEN)),
            resident((HIDDEN, NUM_ACTIONS)), resident((1, NUM_ACTIONS)),
        ],
        out_specs=out_spec,
        compiler_params=pltpu.CompilerParams(
            # Batch axis is independent -> megacore sharding on v7x.
            dimension_semantics=("parallel",),
            vmem_limit_bytes=_VMEM_LIMIT_BYTES,
        ),
    )(
        x,
        params["w1"], params["b1"],
        params["w2"], params["b2"],
        params["w3"], params["b3"],
    )
    return out[:B]


def init_params(key):
    """Deterministic init mimicking nn.Linear default: U(-1/sqrt(fan_in), +1/sqrt(fan_in)).

    Weights stored as (in, out) == PyTorch weight.T, in bf16 (MXU-native);
    biases stored as (1, out) in f32.
    """
    def linear(key, fan_in, fan_out):
        kw, kb = jax.random.split(key)
        bound = 1.0 / jnp.sqrt(jnp.float32(fan_in))
        w = jax.random.uniform(kw, (fan_in, fan_out), jnp.float32, -bound, bound)
        b = jax.random.uniform(kb, (1, fan_out), jnp.float32, -bound, bound)
        return w.astype(jnp.bfloat16), b

    k1, k2, k3 = jax.random.split(key, 3)
    w1, b1 = linear(k1, OBS_SIZE, HIDDEN)
    w2, b2 = linear(k2, HIDDEN, HIDDEN)
    w3, b3 = linear(k3, HIDDEN, NUM_ACTIONS)
    return {"w1": w1, "b1": b1, "w2": w2, "b2": b2, "w3": w3, "b3": b3}


def qnet_reference(x, params):
    return _qnet_jnp(x, params)


if __name__ == "__main__":
    key = jax.random.PRNGKey(0)
    kp, kx1, kx2 = jax.random.split(key, 3)
    params = init_params(kp)

    # Small rollout-style batch: exercises the plain-jnp fallback path.
    batch = 8
    x_small = jax.random.normal(kx1, (batch, OBS_SIZE), jnp.float32)
    out_small = jax.block_until_ready(qnet_forward(x_small, params))
    ref_small = qnet_reference(x_small, params)
    assert out_small.shape == (batch, NUM_ACTIONS)
    assert jnp.allclose(out_small, ref_small, atol=2e-3, rtol=2e-3)

    # Larger, ragged batch: exercises the Pallas path (adaptive tile_b=1032,
    # 2 grid steps, 12 rows of padding instead of the old 1020).
    big_batch = 2052
    x_big = jax.random.normal(kx2, (big_batch, OBS_SIZE), jnp.float32)
    out_big = jax.block_until_ready(qnet_forward(x_big, params))
    ref_big = qnet_reference(x_big, params)
    assert out_big.shape == (big_batch, NUM_ACTIONS)
    assert jnp.allclose(out_big, ref_big, atol=2e-3, rtol=2e-3)
    assert bool(jnp.all(jnp.isfinite(out_big)))

    print("KERNEL_OK")
</pallas_src>

<mosaic_0001>
module attributes {stable_mosaic.version = 11 : i64} {
  func.func @qnet_kernel(%arg0: i32, %arg1: memref<1032x4xf32, #tpu.memory_space<vmem>>, %arg2: memref<4x64xbf16, #tpu.memory_space<vmem>>, %arg3: memref<1x64xf32, #tpu.memory_space<vmem>>, %arg4: memref<64x64xbf16, #tpu.memory_space<vmem>>, %arg5: memref<1x64xf32, #tpu.memory_space<vmem>>, %arg6: memref<64x4xbf16, #tpu.memory_space<vmem>>, %arg7: memref<1x4xf32, #tpu.memory_space<vmem>>, %arg8: memref<1032x4xf32, #tpu.memory_space<vmem>>) attributes {dimension_semantics = [#tpu.dimension_semantics<parallel>], iteration_bounds = array<i64: 2>, scalar_prefetch = 0 : i64, scratch_operands = 0 : i64, tpu.core_type = #tpu.core_type<tc>, window_params = [{transform_indices = @transform_0, window_bounds = array<i64: 1032, 4>}, {pipeline_mode = #tpu.pipeline_mode<synchronous>, transform_indices = @transform_1, window_bounds = array<i64: 4, 64>}, {pipeline_mode = #tpu.pipeline_mode<synchronous>, transform_indices = @transform_2, window_bounds = array<i64: 1, 64>}, {pipeline_mode = #tpu.pipeline_mode<synchronous>, transform_indices = @transform_3, window_bounds = array<i64: 64, 64>}, {pipeline_mode = #tpu.pipeline_mode<synchronous>, transform_indices = @transform_4, window_bounds = array<i64: 1, 64>}, {pipeline_mode = #tpu.pipeline_mode<synchronous>, transform_indices = @transform_5, window_bounds = array<i64: 64, 4>}, {pipeline_mode = #tpu.pipeline_mode<synchronous>, transform_indices = @transform_6, window_bounds = array<i64: 1, 4>}, {transform_indices = @transform_7, window_bounds = array<i64: 1032, 4>}]} {
    %c0 = arith.constant 0 : index
    %c0_0 = arith.constant 0 : index
    %0 = vector.load %arg1[%c0, %c0_0] : memref<1032x4xf32, #tpu.memory_space<vmem>>, vector<1032x4xf32>
    %1 = arith.truncf %0 : vector<1032x4xf32> to vector<1032x4xbf16>
    %c0_1 = arith.constant 0 : index
    %c0_2 = arith.constant 0 : index
    %2 = vector.load %arg2[%c0_1, %c0_2] : memref<4x64xbf16, #tpu.memory_space<vmem>>, vector<4x64xbf16>
    %cst = arith.constant dense<0.000000e+00> : vector<1032x64xf32>
    %3 = tpu.matmul %1, %2, %cst {dimension_numbers = #tpu.dot_dimension_numbers<[1], [0], [0], [1], [0, 0, 1, 1], [], []>} : vector<1032x4xbf16>, vector<4x64xbf16>, vector<1032x64xf32> -> vector<1032x64xf32>
    %c0_3 = arith.constant 0 : index
    %c0_4 = arith.constant 0 : index
    %4 = vector.load %arg3[%c0_3, %c0_4] : memref<1x64xf32, #tpu.memory_space<vmem>>, vector<1x64xf32>
    %5 = vector.broadcast %4 : vector<1x64xf32> to vector<1032x64xf32>
    %6 = arith.addf %3, %5 : vector<1032x64xf32>
    %7 = math.tanh %6 : vector<1032x64xf32>
    %8 = arith.truncf %7 : vector<1032x64xf32> to vector<1032x64xbf16>
    %c0_5 = arith.constant 0 : index
    %c0_6 = arith.constant 0 : index
    %9 = vector.load %arg4[%c0_5, %c0_6] : memref<64x64xbf16, #tpu.memory_space<vmem>>, vector<64x64xbf16>
    %cst_7 = arith.constant dense<0.000000e+00> : vector<1032x64xf32>
    %10 = tpu.matmul %8, %9, %cst_7 {dimension_numbers = #tpu.dot_dimension_numbers<[1], [0], [0], [1], [0, 0, 1, 1], [], []>} : vector<1032x64xbf16>, vector<64x64xbf16>, vector<1032x64xf32> -> vector<1032x64xf32>
    %c0_8 = arith.constant 0 : index
    %c0_9 = arith.constant 0 : index
    %11 = vector.load %arg5[%c0_8, %c0_9] : memref<1x64xf32, #tpu.memory_space<vmem>>, vector<1x64xf32>
    %12 = vector.broadcast %11 : vector<1x64xf32> to vector<1032x64xf32>
    %13 = arith.addf %10, %12 : vector<1032x64xf32>
    %14 = math.tanh %13 : vector<1032x64xf32>
    %15 = arith.truncf %14 : vector<1032x64xf32> to vector<1032x64xbf16>
    %c0_10 = arith.constant 0 : index
    %c0_11 = arith.constant 0 : index
    %16 = vector.load %arg6[%c0_10, %c0_11] : memref<64x4xbf16, #tpu.memory_space<vmem>>, vector<64x4xbf16>
    %cst_12 = arith.constant dense<0.000000e+00> : vector<1032x4xf32>
    %17 = tpu.matmul %15, %16, %cst_12 {dimension_numbers = #tpu.dot_dimension_numbers<[1], [0], [0], [1], [0, 0, 1, 1], [], []>} : vector<1032x64xbf16>, vector<64x4xbf16>, vector<1032x4xf32> -> vector<1032x4xf32>
    %c0_13 = arith.constant 0 : index
    %c0_14 = arith.constant 0 : index
    %18 = vector.load %arg7[%c0_13, %c0_14] : memref<1x4xf32, #tpu.memory_space<vmem>>, vector<1x4xf32>
    %19 = vector.broadcast %18 : vector<1x4xf32> to vector<1032x4xf32>
    %20 = arith.addf %17, %19 : vector<1032x4xf32>
    %c0_15 = arith.constant 0 : index
    %c0_16 = arith.constant 0 : index
    %21 = vector.load %arg8[%c0_15, %c0_16] : memref<1032x4xf32, #tpu.memory_space<vmem>>, vector<1032x4xf32>
    tpu.vector_store %arg8[%c0_15, %c0_16], %20 {strides = array<i32>} : memref<1032x4xf32, #tpu.memory_space<vmem>>, vector<1032x4xf32>,
    return
  }
  func.func @transform_0(%arg0: i32) -> (i32, i32) {
    %c0_i32 = arith.constant 0 : i32
    %c0_i32_0 = arith.constant 0 : i32
    return %arg0, %c0_i32 : i32, i32
  }
  func.func @transform_1(%arg0: i32) -> (i32, i32) {
    %c0_i32 = arith.constant 0 : i32
    %c0_i32_0 = arith.constant 0 : i32
    %c0_i32_1 = arith.constant 0 : i32
    return %c0_i32, %c0_i32_0 : i32, i32
  }
  func.func @transform_2(%arg0: i32) -> (i32, i32) {
    %c0_i32 = arith.constant 0 : i32
    %c0_i32_0 = arith.constant 0 : i32
    %c0_i32_1 = arith.constant 0 : i32
    return %c0_i32, %c0_i32_0 : i32, i32
  }
  func.func @transform_3(%arg0: i32) -> (i32, i32) {
    %c0_i32 = arith.constant 0 : i32
    %c0_i32_0 = arith.constant 0 : i32
    %c0_i32_1 = arith.constant 0 : i32
    return %c0_i32, %c0_i32_0 : i32, i32
  }
  func.func @transform_4(%arg0: i32) -> (i32, i32) {
    %c0_i32 = arith.constant 0 : i32
    %c0_i32_0 = arith.constant 0 : i32
    %c0_i32_1 = arith.constant 0 : i32
    return %c0_i32, %c0_i32_0 : i32, i32
  }
  func.func @transform_5(%arg0: i32) -> (i32, i32) {
    %c0_i32 = arith.constant 0 : i32
    %c0_i32_0 = arith.constant 0 : i32
    %c0_i32_1 = arith.constant 0 : i32
    return %c0_i32, %c0_i32_0 : i32, i32
  }
  func.func @transform_6(%arg0: i32) -> (i32, i32) {
    %c0_i32 = arith.constant 0 : i32
    %c0_i32_0 = arith.constant 0 : i32
    %c0_i32_1 = arith.constant 0 : i32
    return %c0_i32, %c0_i32_0 : i32, i32
  }
  func.func @transform_7(%arg0: i32) -> (i32, i32) {
    %c0_i32 = arith.constant 0 : i32
    %c0_i32_0 = arith.constant 0 : i32
    return %arg0, %c0_i32 : i32, i32
  }
}

</mosaic_0001>

<llo_original>
// kernel: tpu_custom_call.1
$region0: #{tpu_custom_call.1}
  #allocation0 [shape = 'u32[]', space=smem, size = 0x4, offset = 0x4, fixed_abs, tag = 'smem constant byte address 0x4 - core index']
  #allocation1 [shape = 'u32[72,128]{1,0:T(1,128)}', space=vmem, size = 0x9000, scoped, tag = 'internal scratch']
  %s0 = inlined_call_operand.vmem [shape: f32[2064,4], index: 0, kind: input, shape index: {}]
  %s1 = inlined_call_operand.vmem [shape: bf16[4,64], index: 1, kind: input, shape index: {}]
  %s2 = inlined_call_operand.vmem [shape: f32[1,64], index: 2, kind: input, shape index: {}]
  %s3 = inlined_call_operand.vmem [shape: bf16[64,64], index: 3, kind: input, shape index: {}]
  %s4 = inlined_call_operand.vmem [shape: f32[1,64], index: 4, kind: input, shape index: {}]
  %s5 = inlined_call_operand.vmem [shape: bf16[64,4], index: 5, kind: input, shape index: {}]
  %s6 = inlined_call_operand.vmem [shape: f32[1,4], index: 6, kind: input, shape index: {}]
  %s7 = inlined_call_operand.vmem [shape: f32[2064,4], index: 7, kind: output, shape index: {}]
  %s8 = sld [smem:[#allocation0]]
  $region61: #{tpu_custom_call.1} parent=0
    _
  %s10 = ssub.s32 1, %s8
  %s11 = scalar_select 0, %s10, %s8
  loop: start=0, step=1, limit=4
  $region2: #{tpu_custom_call.1} parent=0 // loop_pre_header
    _
  $region3: #{tpu_custom_call.1} parent=0 // loop_header
    %s13 = sphi 0, %s17
    %p14 = scmp.ge.s32.totalorder %s13, 4
    %s23 = sphi 0, %s25
    %s26 = sphi 0, %s23
    %s27 = sphi 0, %s26
    %s43 = sphi 0, %s27
    %s47 = sphi 0, %s47
    %s49 = sphi 0, %s47
    %s50 = sphi 0, %s49
    %s64 = sphi 0, %s50
    %s68 = sphi 0, %s68
    %s70 = sphi 0, %s68
    %s71 = sphi 0, %s70
    %s85 = sphi 0, %s71
    %s89 = sphi 0, %s89
    %s91 = sphi 0, %s89
    %s92 = sphi 0, %s91
    %s106 = sphi 0, %s92
    %s110 = sphi 0, %s110
    %s112 = sphi 0, %s110
    %s113 = sphi 0, %s112
    %s127 = sphi 0, %s113
    %s131 = sphi 0, %s131
    %s133 = sphi 0, %s131
    %s134 = sphi 0, %s133
    %s148 = sphi 0, %s134
    %s152 = sphi 0, %s152
    %s154 = sphi 0, %s152
    %s155 = sphi 0, %s154
    %s169 = sphi 0, %s155
    %s175 = sphi 0, %s177
    %s178 = sphi 0, %s175
    %s179 = sphi 0, %s178
    %s195 = sphi 0, %s179
  $region4: #{tpu_custom_call.1} parent=0 // loop_header_branch
    %16 = sbr.rel (%p14) target = $region8
  $region5: #{tpu_custom_call.1} parent=0 // loop_body
    %s18 = ssub.s32 %s13, 1
    %s19 = ssub.s32 %s13, 2
    %s20 = sadd.s32 %s13, 1
    %s21 = ssub.s32 %s13, %s20
    %p22 = scmp.eq.s32.totalorder %s21, 0
    %s24 = sadd.s32 %s23, 1
    %s25 = scalar_select %p22, %s23, %s24
    %p28 = pneg %p22
    %p29 = scmp.eq.s32.totalorder %s13, 1
    %p30 = por %p28, %p29
    %p31 = scmp.ne.s32.totalorder %s23, %s26
    %p32 = scmp.eq.s32.totalorder %s13, 0
    %p33 = por %p31, %p32
    %p34 = scmp.ne.s32.totalorder %s23, %s26
    %p35 = scmp.eq.s32.totalorder %s18, 1
    %p36 = por %p34, %p35
    %p37 = scmp.ne.s32.totalorder %s26, %s27
    %p38 = scmp.eq.s32.totalorder %s18, 0
    %p39 = por %p37, %p38
    %p40 = scmp.ne.s32.totalorder %s26, %s27
    %p41 = scmp.eq.s32.totalorder %s19, 1
    %p42 = por %p40, %p41
    %p44 = scmp.ne.s32.totalorder %s27, %s43
    %p45 = scmp.eq.s32.totalorder %s19, 0
    %p46 = por %p44, %p45
    %s48 = sadd.s32 %s47, 1
    %p51 = scmp.eq.s32.totalorder %s13, 1
    %p52 = scmp.ne.s32.totalorder %s47, %s49
    %p53 = scmp.eq.s32.totalorder %s13, 0
    %p54 = por %p52, %p53
    %p55 = scmp.ne.s32.totalorder %s47, %s49
    %p56 = scmp.eq.s32.totalorder %s18, 1
    %p57 = por %p55, %p56
    %p58 = scmp.ne.s32.totalorder %s49, %s50
    %p59 = scmp.eq.s32.totalorder %s18, 0
    %p60 = por %p58, %p59
    %p61 = scmp.ne.s32.totalorder %s49, %s50
    %p62 = scmp.eq.s32.totalorder %s19, 1
    %p63 = por %p61, %p62
    %p65 = scmp.ne.s32.totalorder %s50, %s64
    %p66 = scmp.eq.s32.totalorder %s19, 0
    %p67 = por %p65, %p66
    %s69 = sadd.s32 %s68, 1
    %p72 = scmp.eq.s32.totalorder %s13, 1
    %p73 = scmp.ne.s32.totalorder %s68, %s70
    %p74 = scmp.eq.s32.totalorder %s13, 0
    %p75 = por %p73, %p74
    %p76 = scmp.ne.s32.totalorder %s68, %s70
    %p77 = scmp.eq.s32.totalorder %s18, 1
    %p78 = por %p76, %p77
    %p79 = scmp.ne.s32.totalorder %s70, %s71
    %p80 = scmp.eq.s32.totalorder %s18, 0
    %p81 = por %p79, %p80
    %p82 = scmp.ne.s32.totalorder %s70, %s71
    %p83 = scmp.eq.s32.totalorder %s19, 1
    %p84 = por %p82, %p83
    %p86 = scmp.ne.s32.totalorder %s71, %s85
    %p87 = scmp.eq.s32.totalorder %s19, 0
    %p88 = por %p86, %p87
    %s90 = sadd.s32 %s89, 1
    %p93 = scmp.eq.s32.totalorder %s13, 1
    %p94 = scmp.ne.s32.totalorder %s89, %s91
    %p95 = scmp.eq.s32.totalorder %s13, 0
    %p96 = por %p94, %p95
    %p97 = scmp.ne.s32.totalorder %s89, %s91
    %p98 = scmp.eq.s32.totalorder %s18, 1
    %p99 = por %p97, %p98
    %p100 = scmp.ne.s32.totalorder %s91, %s92
    %p101 = scmp.eq.s32.totalorder %s18, 0
    %p102 = por %p100, %p101
    %p103 = scmp.ne.s32.totalorder %s91, %s92
    %p104 = scmp.eq.s32.totalorder %s19, 1
    %p105 = por %p103, %p104
    %p107 = scmp.ne.s32.totalorder %s92, %s106
    %p108 = scmp.eq.s32.totalorder %s19, 0
    %p109 = por %p107, %p108
    %s111 = sadd.s32 %s110, 1
    %p114 = scmp.eq.s32.totalorder %s13, 1
    %p115 = scmp.ne.s32.totalorder %s110, %s112
    %p116 = scmp.eq.s32.totalorder %s13, 0
    %p117 = por %p115, %p116
    %p118 = scmp.ne.s32.totalorder %s110, %s112
    %p119 = scmp.eq.s32.totalorder %s18, 1
    %p120 = por %p118, %p119
    %p121 = scmp.ne.s32.totalorder %s112, %s113
    %p122 = scmp.eq.s32.totalorder %s18, 0
    %p123 = por %p121, %p122
    %p124 = scmp.ne.s32.totalorder %s112, %s113
    %p125 = scmp.eq.s32.totalorder %s19, 1
    %p126 = por %p124, %p125
    %p128 = scmp.ne.s32.totalorder %s113, %s127
    %p129 = scmp.eq.s32.totalorder %s19, 0
    %p130 = por %p128, %p129
    %s132 = sadd.s32 %s131, 1
    %p135 = scmp.eq.s32.totalorder %s13, 1
    %p136 = scmp.ne.s32.totalorder %s131, %s133
    %p137 = scmp.eq.s32.totalorder %s13, 0
    %p138 = por %p136, %p137
    %p139 = scmp.ne.s32.totalorder %s131, %s133
    %p140 = scmp.eq.s32.totalorder %s18, 1
    %p141 = por %p139, %p140
    %p142 = scmp.ne.s32.totalorder %s133, %s134
    %p143 = scmp.eq.s32.totalorder %s18, 0
    %p144 = por %p142, %p143
    %p145 = scmp.ne.s32.totalorder %s133, %s134
    %p146 = scmp.eq.s32.totalorder %s19, 1
    %p147 = por %p145, %p146
    %p149 = scmp.ne.s32.totalorder %s134, %s148
    %p150 = scmp.eq.s32.totalorder %s19, 0
    %p151 = por %p149, %p150
    %s153 = sadd.s32 %s152, 1
    %p156 = scmp.eq.s32.totalorder %s13, 1
    %p157 = scmp.ne.s32.totalorder %s152, %s154
    %p158 = scmp.eq.s32.totalorder %s13, 0
    %p159 = por %p157, %p158
    %p160 = scmp.ne.s32.totalorder %s152, %s154
    %p161 = scmp.eq.s32.totalorder %s18, 1
    %p162 = por %p160, %p161
    %p163 = scmp.ne.s32.totalorder %s154, %s155
    %p164 = scmp.eq.s32.totalorder %s18, 0
    %p165 = por %p163, %p164
    %p166 = scmp.ne.s32.totalorder %s154, %s155
    %p167 = scmp.eq.s32.totalorder %s19, 1
    %p168 = por %p166, %p167
    %p170 = scmp.ne.s32.totalorder %s155, %s169
    %p171 = scmp.eq.s32.totalorder %s19, 0
    %p172 = por %p170, %p171
    %s173 = ssub.s32 %s13, %s20
    %p174 = scmp.eq.s32.totalorder %s173, 0
    %s176 = sadd.s32 %s175, 1
    %s177 = scalar_select %p174, %s175, %s176
    %p180 = pneg %p174
    %p181 = scmp.eq.s32.totalorder %s13, 1
    %p182 = por %p180, %p181
    %p183 = scmp.ne.s32.totalorder %s175, %s178
    %p184 = scmp.eq.s32.totalorder %s13, 0
    %p185 = por %p183, %p184
    %p186 = scmp.ne.s32.totalorder %s175, %s178
    %p187 = scmp.eq.s32.totalorder %s18, 1
    %p188 = por %p186, %p187
    %p189 = scmp.ne.s32.totalorder %s178, %s179
    %p190 = scmp.eq.s32.totalorder %s18, 0
    %p191 = por %p189, %p190
    %p192 = scmp.ne.s32.totalorder %s178, %s179
    %p193 = scmp.eq.s32.totalorder %s19, 1
    %p194 = por %p192, %p193
    %p196 = scmp.ne.s32.totalorder %s179, %s195
    %p197 = scmp.eq.s32.totalorder %s19, 0
    %p198 = por %p196, %p197
    %p199 = scmp.le.s32.totalorder 1, %s13
    %p200 = scmp.lt.s32.totalorder %s13, 3
    %p201 = pnand %p199, %p200
    %p202 = pneg %p201
    // Predicated region
    $region9: #{tpu_custom_call.1} parent=5 // pred_check
      _
    $region10: #{tpu_custom_call.1} parent=5 // pred_check_branch
      %204 = sbr.rel (%p201) target = $region12
    $region11: #{tpu_custom_call.1} parent=5 // pred_region
      %s205 = ssub.s32 %s13, 1
      // Predicated region
      $region13: #{tpu_custom_call.1} parent=11 // pred_check
        %p206 = pneg %p60
      $region14: #{tpu_custom_call.1} parent=11 // pred_check_branch
        %208 = sbr.rel (%p206) target = $region16
      $region15: #{tpu_custom_call.1} parent=11 // pred_region
        _
      $region16: #{tpu_custom_call.1} parent=11 // pred_fallthru
        _
      // Predicated region
      $region17: #{tpu_custom_call.1} parent=11 // pred_check
        %p209 = pneg %p81
      $region18: #{tpu_custom_call.1} parent=11 // pred_check_branch
        %211 = sbr.rel (%p209) target = $region20
      $region19: #{tpu_custom_call.1} parent=11 // pred_region
        _
      $region20: #{tpu_custom_call.1} parent=11 // pred_fallthru
        _
      // Predicated region
      $region21: #{tpu_custom_call.1} parent=11 // pred_check
        %p212 = pneg %p102
      $region22: #{tpu_custom_call.1} parent=11 // pred_check_branch
        %214 = sbr.rel (%p212) target = $region24
      $region23: #{tpu_custom_call.1} parent=11 // pred_region
        _
      $region24: #{tpu_custom_call.1} parent=11 // pred_fallthru
        _
      // Predicated region
      $region25: #{tpu_custom_call.1} parent=11 // pred_check
        %p215 = pneg %p123
      $region26: #{tpu_custom_call.1} parent=11 // pred_check_branch
        %217 = sbr.rel (%p215) target = $region28
      $region27: #{tpu_custom_call.1} parent=11 // pred_region
        _
      $region28: #{tpu_custom_call.1} parent=11 // pred_fallthru
        _
      // Predicated region
      $region29: #{tpu_custom_call.1} parent=11 // pred_check
        %p218 = pneg %p144
      $region30: #{tpu_custom_call.1} parent=11 // pred_check_branch
        %220 = sbr.rel (%p218) target = $region32
      $region31: #{tpu_custom_call.1} parent=11 // pred_region
        _
      $region32: #{tpu_custom_call.1} parent=11 // pred_fallthru
        _
      // Predicated region
      $region33: #{tpu_custom_call.1} parent=11 // pred_check
        %p221 = pneg %p165
      $region34: #{tpu_custom_call.1} parent=11 // pred_check_branch
        %223 = sbr.rel (%p221) target = $region36
      $region35: #{tpu_custom_call.1} parent=11 // pred_region
        _
      $region36: #{tpu_custom_call.1} parent=11 // pred_fallthru
        _
    $region12: #{tpu_custom_call.1} parent=5 // pred_fallthru
      _
    %p224 = scmp.lt.s32.totalorder %s13, 2
    // Predicated region
    $region37: #{tpu_custom_call.1} parent=5 // pred_check
      %p225 = pneg %p224
    $region38: #{tpu_custom_call.1} parent=5 // pred_check_branch
      %227 = sbr.rel (%p225) target = $region40
    $region39: #{tpu_custom_call.1} parent=5 // pred_region
      // Predicated region
      $region41: #{tpu_custom_call.1} parent=39 // pred_check
        %p228 = pneg %p33
      $region42: #{tpu_custom_call.1} parent=39 // pred_check_branch
        %230 = sbr.rel (%p228) target = $region44
      $region43: #{tpu_custom_call.1} parent=39 // pred_region
        %s231 = smul.u32 129, %s13
        %p232 = scmp.lt.s32.totalorder %s231, 257
        %s233 = scalar_select %p232, %s231, 257
        %s234 = smul.addr %s233, 8
        %s235 = scalar_lea.vmem %s0, %s234
        %s236 = smul.u32 129, %s13
      $region44: #{tpu_custom_call.1} parent=39 // pred_fallthru
        _
    $region40: #{tpu_custom_call.1} parent=5 // pred_fallthru
      _
    %p237 = scmp.le.s32.totalorder 1, %s13
    %p238 = scmp.lt.s32.totalorder %s13, 3
    %p239 = pnand %p237, %p238
    %p240 = pneg %p239
    // Predicated region
    $region45: #{tpu_custom_call.1} parent=5 // pred_check
      _
    $region46: #{tpu_custom_call.1} parent=5 // pred_check_branch
      %242 = sbr.rel (%p239) target = $region48
    $region47: #{tpu_custom_call.1} parent=5 // pred_region
      %s243 = ssub.s32 %s13, 1
      %s244 = smul.u32 129, %s18
      %p245 = scmp.lt.s32.totalorder %s244, 257
      %s246 = scalar_select %p245, %s244, 257
      %s247 = smul.addr %s246, 8
      %s248 = scalar_lea.vmem %s0, %s247
      %p249 = pneg %p39
      %p250 = pneg %p36
      %p251 = pneg %p60
      %p252 = pneg %p57
      %p253 = pneg %p81
      %p254 = pneg %p78
      %p255 = pneg %p102
      %p256 = pneg %p99
      %p257 = pneg %p123
      %p258 = pneg %p120
      %p259 = pneg %p144
      %p260 = pneg %p141
      %p261 = pneg %p165
      %p262 = pneg %p162
      %p263 = pneg %p191
      %p264 = pneg %p188
      %s265 = smul.u32 129, %s18
      %p266 = scmp.lt.s32.totalorder %s265, 257
      %s267 = scalar_select %p266, %s265, 257
      %s268 = smul.addr %s267, 8
      %s269 = scalar_lea.vmem %s7, %s268
      %s270 = smul.u32 129, %s18
      %p271 = scmp.lt.s32.totalorder %s270, 257
      %s272 = scalar_select %p271, %s270, 257
      %s273 = smul.addr %s272, 8
      %s274 = scalar_lea.vmem %s0, %s273
      %s275 = smul.u32 129, %s18
      %s276 = smul.u32 129, %s18
      %p277 = scmp.lt.s32.totalorder %s276, 257
      %s278 = scalar_select %p277, %s276, 257
      %s279 = smul.addr %s278, 8
      %s280 = scalar_lea.vmem %s7, %s279
      %s281 = smul.u32 129, %s18
      %v283 = vld [vmem:[%s274] sm:$0xff]
      %v284 = vld [vmem:[%s274 + $0x8] sm:$0xff]
      %v285 = vld [vmem:[%s274 + $0x10] sm:$0xff]
      %v286 = vld [vmem:[%s274 + $0x18] sm:$0xff]
      %v287 = vld [vmem:[%s274 + $0x20] sm:$0xff]
      %v288 = vld [vmem:[%s274 + $0x28] sm:$0xff]
      %v289 = vld [vmem:[%s274 + $0x30] sm:$0xff]
      %v290 = vld [vmem:[%s274 + $0x38] sm:$0xff]
      %v291 = vld [vmem:[%s274 + $0x40] sm:$0xff]
      %v292 = vld [vmem:[%s274 + $0x48] sm:$0xff]
      %v293 = vld [vmem:[%s274 + $0x50] sm:$0xff]
      %v294 = vld [vmem:[%s274 + $0x58] sm:$0xff]
      %v295 = vld [vmem:[%s274 + $0x60] sm:$0xff]
      %v296 = vld [vmem:[%s274 + $0x68] sm:$0xff]
      %v297 = vld [vmem:[%s274 + $0x70] sm:$0xff]
      %v298 = vld [vmem:[%s274 + $0x78] sm:$0xff]
      %v299 = vld [vmem:[%s274 + $0x80] sm:$0xff]
      %v300 = vld [vmem:[%s274 + $0x88] sm:$0xff]
      %v301 = vld [vmem:[%s274 + $0x90] sm:$0xff]
      %v302 = vld [vmem:[%s274 + $0x98] sm:$0xff]
      %v303 = vld [vmem:[%s274 + $0xa0] sm:$0xff]
      %v304 = vld [vmem:[%s274 + $0xa8] sm:$0xff]
      %v305 = vld [vmem:[%s274 + $0xb0] sm:$0xff]
      %v306 = vld [vmem:[%s274 + $0xb8] sm:$0xff]
      %v307 = vld [vmem:[%s274 + $0xc0] sm:$0xff]
      %v308 = vld [vmem:[%s274 + $0xc8] sm:$0xff]
      %v309 = vld [vmem:[%s274 + $0xd0] sm:$0xff]
      %v310 = vld [vmem:[%s274 + $0xd8] sm:$0xff]
      %v311 = vld [vmem:[%s274 + $0xe0] sm:$0xff]
      %v312 = vld [vmem:[%s274 + $0xe8] sm:$0xff]
      %v313 = vld [vmem:[%s274 + $0xf0] sm:$0xff]
      %v314 = vld [vmem:[%s274 + $0xf8] sm:$0xff]
      %v315 = vld [vmem:[%s274 + $0x100] sm:$0xff]
      %v316 = vld [vmem:[%s274 + $0x108] sm:$0xff]
      %v317 = vld [vmem:[%s274 + $0x110] sm:$0xff]
      %v318 = vld [vmem:[%s274 + $0x118] sm:$0xff]
      %v319 = vld [vmem:[%s274 + $0x120] sm:$0xff]
      %v320 = vld [vmem:[%s274 + $0x128] sm:$0xff]
      %v321 = vld [vmem:[%s274 + $0x130] sm:$0xff]
      %v322 = vld [vmem:[%s274 + $0x138] sm:$0xff]
      %v323 = vld [vmem:[%s274 + $0x140] sm:$0xff]
      %v324 = vld [vmem:[%s274 + $0x148] sm:$0xff]
      %v325 = vld [vmem:[%s274 + $0x150] sm:$0xff]
      %v326 = vld [vmem:[%s274 + $0x158] sm:$0xff]
      %v327 = vld [vmem:[%s274 + $0x160] sm:$0xff]
      %v328 = vld [vmem:[%s274 + $0x168] sm:$0xff]
      %v329 = vld [vmem:[%s274 + $0x170] sm:$0xff]
      %v330 = vld [vmem:[%s274 + $0x178] sm:$0xff]
      %v331 = vld [vmem:[%s274 + $0x180] sm:$0xff]
      %v332 = vld [vmem:[%s274 + $0x188] sm:$0xff]
      %v333 = vld [vmem:[%s274 + $0x190] sm:$0xff]
      %v334 = vld [vmem:[%s274 + $0x198] sm:$0xff]
      %v335 = vld [vmem:[%s274 + $0x1a0] sm:$0xff]
      %v336 = vld [vmem:[%s274 + $0x1a8] sm:$0xff]
      %v337 = vld [vmem:[%s274 + $0x1b0] sm:$0xff]
      %v338 = vld [vmem:[%s274 + $0x1b8] sm:$0xff]
      %v339 = vld [vmem:[%s274 + $0x1c0] sm:$0xff]
      %v340 = vld [vmem:[%s274 + $0x1c8] sm:$0xff]
      %v341 = vld [vmem:[%s274 + $0x1d0] sm:$0xff]
      %v342 = vld [vmem:[%s274 + $0x1d8] sm:$0xff]
      %v343 = vld [vmem:[%s274 + $0x1e0] sm:$0xff]
      %v344 = vld [vmem:[%s274 + $0x1e8] sm:$0xff]
      %v345 = vld [vmem:[%s274 + $0x1f0] sm:$0xff]
      %v346 = vld [vmem:[%s274 + $0x1f8] sm:$0xff]
      %v347 = vld [vmem:[%s274 + $0x200] sm:$0xff]
      %v348 = vld [vmem:[%s274 + $0x208] sm:$0xff]
      %v349 = vld [vmem:[%s274 + $0x210] sm:$0xff]
      %v350 = vld [vmem:[%s274 + $0x218] sm:$0xff]
      %v351 = vld [vmem:[%s274 + $0x220] sm:$0xff]
      %v352 = vld [vmem:[%s274 + $0x228] sm:$0xff]
      %v353 = vld [vmem:[%s274 + $0x230] sm:$0xff]
      %v354 = vld [vmem:[%s274 + $0x238] sm:$0xff]
      %v355 = vld [vmem:[%s274 + $0x240] sm:$0xff]
      %v356 = vld [vmem:[%s274 + $0x248] sm:$0xff]
      %v357 = vld [vmem:[%s274 + $0x250] sm:$0xff]
      %v358 = vld [vmem:[%s274 + $0x258] sm:$0xff]
      %v359 = vld [vmem:[%s274 + $0x260] sm:$0xff]
      %v360 = vld [vmem:[%s274 + $0x268] sm:$0xff]
      %v361 = vld [vmem:[%s274 + $0x270] sm:$0xff]
      %v362 = vld [vmem:[%s274 + $0x278] sm:$0xff]
      %v363 = vld [vmem:[%s274 + $0x280] sm:$0xff]
      %v364 = vld [vmem:[%s274 + $0x288] sm:$0xff]
      %v365 = vld [vmem:[%s274 + $0x290] sm:$0xff]
      %v366 = vld [vmem:[%s274 + $0x298] sm:$0xff]
      %v367 = vld [vmem:[%s274 + $0x2a0] sm:$0xff]
      %v368 = vld [vmem:[%s274 + $0x2a8] sm:$0xff]
      %v369 = vld [vmem:[%s274 + $0x2b0] sm:$0xff]
      %v370 = vld [vmem:[%s274 + $0x2b8] sm:$0xff]
      %v371 = vld [vmem:[%s274 + $0x2c0] sm:$0xff]
      %v372 = vld [vmem:[%s274 + $0x2c8] sm:$0xff]
      %v373 = vld [vmem:[%s274 + $0x2d0] sm:$0xff]
      %v374 = vld [vmem:[%s274 + $0x2d8] sm:$0xff]
      %v375 = vld [vmem:[%s274 + $0x2e0] sm:$0xff]
      %v376 = vld [vmem:[%s274 + $0x2e8] sm:$0xff]
      %v377 = vld [vmem:[%s274 + $0x2f0] sm:$0xff]
      %v378 = vld [vmem:[%s274 + $0x2f8] sm:$0xff]
      %v379 = vld [vmem:[%s274 + $0x300] sm:$0xff]
      %v380 = vld [vmem:[%s274 + $0x308] sm:$0xff]
      %v381 = vld [vmem:[%s274 + $0x310] sm:$0xff]
      %v382 = vld [vmem:[%s274 + $0x318] sm:$0xff]
      %v383 = vld [vmem:[%s274 + $0x320] sm:$0xff]
      %v384 = vld [vmem:[%s274 + $0x328] sm:$0xff]
      %v385 = vld [vmem:[%s274 + $0x330] sm:$0xff]
      %v386 = vld [vmem:[%s274 + $0x338] sm:$0xff]
      %v387 = vld [vmem:[%s274 + $0x340] sm:$0xff]
      %v388 = vld [vmem:[%s274 + $0x348] sm:$0xff]
      %v389 = vld [vmem:[%s274 + $0x350] sm:$0xff]
      %v390 = vld [vmem:[%s274 + $0x358] sm:$0xff]
      %v391 = vld [vmem:[%s274 + $0x360] sm:$0xff]
      %v392 = vld [vmem:[%s274 + $0x368] sm:$0xff]
      %v393 = vld [vmem:[%s274 + $0x370] sm:$0xff]
      %v394 = vld [vmem:[%s274 + $0x378] sm:$0xff]
      %v395 = vld [vmem:[%s274 + $0x380] sm:$0xff]
      %v396 = vld [vmem:[%s274 + $0x388] sm:$0xff]
      %v397 = vld [vmem:[%s274 + $0x390] sm:$0xff]
      %v398 = vld [vmem:[%s274 + $0x398] sm:$0xff]
      %v399 = vld [vmem:[%s274 + $0x3a0] sm:$0xff]
      %v400 = vld [vmem:[%s274 + $0x3a8] sm:$0xff]
      %v401 = vld [vmem:[%s274 + $0x3b0] sm:$0xff]
      %v402 = vld [vmem:[%s274 + $0x3b8] sm:$0xff]
      %v403 = vld [vmem:[%s274 + $0x3c0] sm:$0xff]
      %v404 = vld [vmem:[%s274 + $0x3c8] sm:$0xff]
      %v405 = vld [vmem:[%s274 + $0x3d0] sm:$0xff]
      %v406 = vld [vmem:[%s274 + $0x3d8] sm:$0xff]
      %v407 = vld [vmem:[%s274 + $0x3e0] sm:$0xff]
      %v408 = vld [vmem:[%s274 + $0x3e8] sm:$0xff]
      %v409 = vld [vmem:[%s274 + $0x3f0] sm:$0xff]
      %v410 = vld [vmem:[%s274 + $0x3f8] sm:$0xff]
      %v411 = vld [vmem:[%s274 + $0x400] sm:$0xff]
      %v412 = vpack.c.bf16 %v284, %v283
      %v413 = vpack.c.bf16 %v286, %v285
      %v414 = vpack.c.bf16 %v288, %v287
      %v415 = vpack.c.bf16 %v290, %v289
      %v416 = vpack.c.bf16 %v292, %v291
      %v417 = vpack.c.bf16 %v294, %v293
      %v418 = vpack.c.bf16 %v296, %v295
      %v419 = vpack.c.bf16 %v298, %v297
      %v420 = vpack.c.bf16 %v300, %v299
      %v421 = vpack.c.bf16 %v302, %v301
      %v422 = vpack.c.bf16 %v304, %v303
      %v423 = vpack.c.bf16 %v306, %v305
      %v424 = vpack.c.bf16 %v308, %v307
      %v425 = vpack.c.bf16 %v310, %v309
      %v426 = vpack.c.bf16 %v312, %v311
      %v427 = vpack.c.bf16 %v314, %v313
      %v428 = vpack.c.bf16 %v316, %v315
      %v429 = vpack.c.bf16 %v318, %v317
      %v430 = vpack.c.bf16 %v320, %v319
      %v431 = vpack.c.bf16 %v322, %v321
      %v432 = vpack.c.bf16 %v324, %v323
      %v433 = vpack.c.bf16 %v326, %v325
      %v434 = vpack.c.bf16 %v328, %v327
      %v435 = vpack.c.bf16 %v330, %v329
      %v436 = vpack.c.bf16 %v332, %v331
      %v437 = vpack.c.bf16 %v334, %v333
      %v438 = vpack.c.bf16 %v336, %v335
      %v439 = vpack.c.bf16 %v338, %v337
      %v440 = vpack.c.bf16 %v340, %v339
      %v441 = vpack.c.bf16 %v342, %v341
      %v442 = vpack.c.bf16 %v344, %v343
      %v443 = vpack.c.bf16 %v346, %v345
      %v444 = vpack.c.bf16 %v348, %v347
      %v445 = vpack.c.bf16 %v350, %v349
      %v446 = vpack.c.bf16 %v352, %v351
      %v447 = vpack.c.bf16 %v354, %v353
      %v448 = vpack.c.bf16 %v356, %v355
      %v449 = vpack.c.bf16 %v358, %v357
      %v450 = vpack.c.bf16 %v360, %v359
      %v451 = vpack.c.bf16 %v362, %v361
      %v452 = vpack.c.bf16 %v364, %v363
      %v453 = vpack.c.bf16 %v366, %v365
      %v454 = vpack.c.bf16 %v368, %v367
      %v455 = vpack.c.bf16 %v370, %v369
      %v456 = vpack.c.bf16 %v372, %v371
      %v457 = vpack.c.bf16 %v374, %v373
      %v458 = vpack.c.bf16 %v376, %v375
      %v459 = vpack.c.bf16 %v378, %v377
      %v460 = vpack.c.bf16 %v380, %v379
      %v461 = vpack.c.bf16 %v382, %v381
      %v462 = vpack.c.bf16 %v384, %v383
      %v463 = vpack.c.bf16 %v386, %v385
      %v464 = vpack.c.bf16 %v388, %v387
      %v465 = vpack.c.bf16 %v390, %v389
      %v466 = vpack.c.bf16 %v392, %v391
      %v467 = vpack.c.bf16 %v394, %v393
      %v468 = vpack.c.bf16 %v396, %v395
      %v469 = vpack.c.bf16 %v398, %v397
      %v470 = vpack.c.bf16 %v400, %v399
      %v471 = vpack.c.bf16 %v402, %v401
      %v472 = vpack.c.bf16 %v404, %v403
      %v473 = vpack.c.bf16 %v406, %v405
      %v474 = vpack.c.bf16 %v408, %v407
      %v475 = vpack.c.bf16 %v410, %v409
      %v476 = vpack.c.bf16 %v411, %v411
      %v477 = vld [vmem:[%s1] sm:$0x3]
      %v478 = vld [vmem:[%s2] sm:$0x1]
      %v480 = vperm.slane %v478, 0
      %vm482 = vcmask 31744
      %v484 = vsel %vm482, %v412, 0
      %v487 = vsel %vm482, %v413, 0
      %v490 = vsel %vm482, %v414, 0
      %v493 = vsel %vm482, %v415, 0
      %v496 = vsel %vm482, %v416, 0
      %v499 = vsel %vm482, %v417, 0
      %v502 = vsel %vm482, %v418, 0
      %v505 = vsel %vm482, %v419, 0
      %v508 = vsel %vm482, %v420, 0
      %v511 = vsel %vm482, %v421, 0
      %v514 = vsel %vm482, %v422, 0
      %v517 = vsel %vm482, %v423, 0
      %v520 = vsel %vm482, %v424, 0
      %v523 = vsel %vm482, %v425, 0
      %v526 = vsel %vm482, %v426, 0
      %v529 = vsel %vm482, %v427, 0
      %v532 = vsel %vm482, %v428, 0
      %v535 = vsel %vm482, %v429, 0
      %v538 = vsel %vm482, %v430, 0
      %v541 = vsel %vm482, %v431, 0
      %v544 = vsel %vm482, %v432, 0
      %v547 = vsel %vm482, %v433, 0
      %v550 = vsel %vm482, %v434, 0
      %v553 = vsel %vm482, %v435, 0
      %v556 = vsel %vm482, %v436, 0
      %v559 = vsel %vm482, %v437, 0
      %v562 = vsel %vm482, %v438, 0
      %v565 = vsel %vm482, %v439, 0
      %v568 = vsel %vm482, %v440, 0
      %v571 = vsel %vm482, %v441, 0
      %v574 = vsel %vm482, %v442, 0
      %v577 = vsel %vm482, %v443, 0
      %v580 = vsel %vm482, %v444, 0
      %v583 = vsel %vm482, %v445, 0
      %v586 = vsel %vm482, %v446, 0
      %v589 = vsel %vm482, %v447, 0
      %v592 = vsel %vm482, %v448, 0
      %v595 = vsel %vm482, %v449, 0
      %v598 = vsel %vm482, %v450, 0
      %v601 = vsel %vm482, %v451, 0
      %v604 = vsel %vm482, %v452, 0
      %v607 = vsel %vm482, %v453, 0
      %v610 = vsel %vm482, %v454, 0
      %v613 = vsel %vm482, %v455, 0
      %v616 = vsel %vm482, %v456, 0
      %v619 = vsel %vm482, %v457, 0
      %v622 = vsel %vm482, %v458, 0
      %v625 = vsel %vm482, %v459, 0
      %v628 = vsel %vm482, %v460, 0
      %v631 = vsel %vm482, %v461, 0
      %v634 = vsel %vm482, %v462, 0
      %v637 = vsel %vm482, %v463, 0
      %v640 = vsel %vm482, %v464, 0
      %v643 = vsel %vm482, %v465, 0
      %v646 = vsel %vm482, %v466, 0
      %v649 = vsel %vm482, %v467, 0
      %v652 = vsel %vm482, %v468, 0
      %v655 = vsel %vm482, %v469, 0
      %v658 = vsel %vm482, %v470, 0
      %v661 = vsel %vm482, %v471, 0
      %v664 = vsel %vm482, %v472, 0
      %v667 = vsel %vm482, %v473, 0
      %v670 = vsel %vm482, %v474, 0
      %v673 = vsel %vm482, %v475, 0
      %v676 = vsel %vm482, %v476, 0
      %vm678 = vcmask 1041408
      %v680 = vsel %vm678, %v477, 0
      %682 = vmatpush.bf16.msra.mxu0 0
      %683 = vmatpush.bf16.msra.mxu0 0
      %684 = vmatpush.bf16.msra.mxu0 0
      %685 = vmatpush.bf16.msra.mxu0 0
      %686 = vmatpush.bf16.msra.mxu0 0
      %687 = vmatpush.bf16.msra.mxu0 0
      %688 = vmatpush.bf16.msra.mxu0 0
      %689 = vmatpush.bf16.msra.mxu0 %v680
      %690 = vmatmul.bf16.gmra.mxu0 %v484
      %v691 = vpop.f32.mrf.mxu0
      %v692 = vadd.f32 %v480, %v691
      %v693 = vpop.f32.mrf.mxu0
      %v694 = vadd.f32 %v480, %v693
      %695 = vmatmul.bf16.gmra.mxu0 %v487
      %v696 = vpop.f32.mrf.mxu0
      %v697 = vadd.f32 %v480, %v696
      %v698 = vpop.f32.mrf.mxu0
      %v699 = vadd.f32 %v480, %v698
      %700 = vmatmul.bf16.gmra.mxu0 %v490
      %v701 = vpop.f32.mrf.mxu0
      %v702 = vadd.f32 %v480, %v701
      %v703 = vpop.f32.mrf.mxu0
      %v704 = vadd.f32 %v480, %v703
      %705 = vmatmul.bf16.gmra.mxu0 %v493
      %v706 = vpop.f32.mrf.mxu0
      %v707 = vadd.f32 %v480, %v706
      %v708 = vpop.f32.mrf.mxu0
      %v709 = vadd.f32 %v480, %v708
      %710 = vmatmul.bf16.gmra.mxu0 %v496
      %v711 = vpop.f32.mrf.mxu0
      %v712 = vadd.f32 %v480, %v711
      %v713 = vpop.f32.mrf.mxu0
      %v714 = vadd.f32 %v480, %v713
      %715 = vmatmul.bf16.gmra.mxu0 %v499
      %v716 = vpop.f32.mrf.mxu0
      %v717 = vadd.f32 %v480, %v716
      %v718 = vpop.f32.mrf.mxu0
      %v719 = vadd.f32 %v480, %v718
      %720 = vmatmul.bf16.gmra.mxu0 %v502
      %v721 = vpop.f32.mrf.mxu0
      %v722 = vadd.f32 %v480, %v721
      %v723 = vpop.f32.mrf.mxu0
      %v724 = vadd.f32 %v480, %v723
      %725 = vmatmul.bf16.gmra.mxu0 %v505
      %v726 = vpop.f32.mrf.mxu0
      %v727 = vadd.f32 %v480, %v726
      %v728 = vpop.f32.mrf.mxu0
      %v729 = vadd.f32 %v480, %v728
      %730 = vmatmul.bf16.gmra.mxu0 %v508
      %v731 = vpop.f32.mrf.mxu0
      %v732 = vadd.f32 %v480, %v731
      %v733 = vpop.f32.mrf.mxu0
      %v734 = vadd.f32 %v480, %v733
      %735 = vmatmul.bf16.gmra.mxu0 %v511
      %v736 = vpop.f32.mrf.mxu0
      %v737 = vadd.f32 %v480, %v736
      %v738 = vpop.f32.mrf.mxu0
      %v739 = vadd.f32 %v480, %v738
      %740 = vmatmul.bf16.gmra.mxu0 %v514
      %v741 = vpop.f32.mrf.mxu0
      %v742 = vadd.f32 %v480, %v741
      %v743 = vpop.f32.mrf.mxu0
      %v744 = vadd.f32 %v480, %v743
      %745 = vmatmul.bf16.gmra.mxu0 %v517
      %v746 = vpop.f32.mrf.mxu0
      %v747 = vadd.f32 %v480, %v746
      %v748 = vpop.f32.mrf.mxu0
      %v749 = vadd.f32 %v480, %v748
      %750 = vmatmul.bf16.gmra.mxu0 %v520
      %v751 = vpop.f32.mrf.mxu0
      %v752 = vadd.f32 %v480, %v751
      %v753 = vpop.f32.mrf.mxu0
      %v754 = vadd.f32 %v480, %v753
      %755 = vmatmul.bf16.gmra.mxu0 %v523
      %v756 = vpop.f32.mrf.mxu0
      %v757 = vadd.f32 %v480, %v756
      %v758 = vpop.f32.mrf.mxu0
      %v759 = vadd.f32 %v480, %v758
      %760 = vmatmul.bf16.gmra.mxu0 %v526
      %v761 = vpop.f32.mrf.mxu0
      %v762 = vadd.f32 %v480, %v761
      %v763 = vpop.f32.mrf.mxu0
      %v764 = vadd.f32 %v480, %v763
      %765 = vmatmul.bf16.gmra.mxu0 %v529
      %v766 = vpop.f32.mrf.mxu0
      %v767 = vadd.f32 %v480, %v766
      %v768 = vpop.f32.mrf.mxu0
      %v769 = vadd.f32 %v480, %v768
      %770 = vmatmul.bf16.gmra.mxu0 %v532
      %v771 = vpop.f32.mrf.mxu0
      %v772 = vadd.f32 %v480, %v771
      %v773 = vpop.f32.mrf.mxu0
      %v774 = vadd.f32 %v480, %v773
      %775 = vmatmul.bf16.gmra.mxu0 %v535
      %v776 = vpop.f32.mrf.mxu0
      %v777 = vadd.f32 %v480, %v776
      %v778 = vpop.f32.mrf.mxu0
      %v779 = vadd.f32 %v480, %v778
      %780 = vmatmul.bf16.gmra.mxu0 %v538
      %v781 = vpop.f32.mrf.mxu0
      %v782 = vadd.f32 %v480, %v781
      %v783 = vpop.f32.mrf.mxu0
      %v784 = vadd.f32 %v480, %v783
      %785 = vmatmul.bf16.gmra.mxu0 %v541
      %v786 = vpop.f32.mrf.mxu0
      %v787 = vadd.f32 %v480, %v786
      %v788 = vpop.f32.mrf.mxu0
      %v789 = vadd.f32 %v480, %v788
      %790 = vmatmul.bf16.gmra.mxu0 %v544
      %v791 = vpop.f32.mrf.mxu0
      %v792 = vadd.f32 %v480, %v791
      %v793 = vpop.f32.mrf.mxu0
      %v794 = vadd.f32 %v480, %v793
      %795 = vmatmul.bf16.gmra.mxu0 %v547
      %v796 = vpop.f32.mrf.mxu0
      %v797 = vadd.f32 %v480, %v796
      %v798 = vpop.f32.mrf.mxu0
      %v799 = vadd.f32 %v480, %v798
      %800 = vmatmul.bf16.gmra.mxu0 %v550
      %v801 = vpop.f32.mrf.mxu0
      %v802 = vadd.f32 %v480, %v801
      %v803 = vpop.f32.mrf.mxu0
      %v804 = vadd.f32 %v480, %v803
      %805 = vmatmul.bf16.gmra.mxu0 %v553
      %v806 = vpop.f32.mrf.mxu0
      %v807 = vadd.f32 %v480, %v806
      %v808 = vpop.f32.mrf.mxu0
      %v809 = vadd.f32 %v480, %v808
      %810 = vmatmul.bf16.gmra.mxu0 %v556
      %v811 = vpop.f32.mrf.mxu0
      %v812 = vadd.f32 %v480, %v811
      %v813 = vpop.f32.mrf.mxu0
      %v814 = vadd.f32 %v480, %v813
      %815 = vmatmul.bf16.gmra.mxu0 %v559
      %v816 = vpop.f32.mrf.mxu0
      %v817 = vadd.f32 %v480, %v816
      %v818 = vpop.f32.mrf.mxu0
      %v819 = vadd.f32 %v480, %v818
      %820 = vmatmul.bf16.gmra.mxu0 %v562
      %v821 = vpop.f32.mrf.mxu0
      %v822 = vadd.f32 %v480, %v821
      %v823 = vpop.f32.mrf.mxu0
      %v824 = vadd.f32 %v480, %v823
      %825 = vmatmul.bf16.gmra.mxu0 %v565
      %v826 = vpop.f32.mrf.mxu0
      %v827 = vadd.f32 %v480, %v826
      %v828 = vpop.f32.mrf.mxu0
      %v829 = vadd.f32 %v480, %v828
      %830 = vmatmul.bf16.gmra.mxu0 %v568
      %v831 = vpop.f32.mrf.mxu0
      %v832 = vadd.f32 %v480, %v831
      %v833 = vpop.f32.mrf.mxu0
      %v834 = vadd.f32 %v480, %v833
      %835 = vmatmul.bf16.gmra.mxu0 %v571
      %v836 = vpop.f32.mrf.mxu0
      %v837 = vadd.f32 %v480, %v836
      %v838 = vpop.f32.mrf.mxu0
      %v839 = vadd.f32 %v480, %v838
      %840 = vmatmul.bf16.gmra.mxu0 %v574
      %v841 = vpop.f32.mrf.mxu0
      %v842 = vadd.f32 %v480, %v841
      %v843 = vpop.f32.mrf.mxu0
      %v844 = vadd.f32 %v480, %v843
      %845 = vmatmul.bf16.gmra.mxu0 %v577
      %v846 = vpop.f32.mrf.mxu0
      %v847 = vadd.f32 %v480, %v846
      %v848 = vpop.f32.mrf.mxu0
      %v849 = vadd.f32 %v480, %v848
      %850 = vmatmul.bf16.gmra.mxu0 %v580
      %v851 = vpop.f32.mrf.mxu0
      %v852 = vadd.f32 %v480, %v851
      %v853 = vpop.f32.mrf.mxu0
      %v854 = vadd.f32 %v480, %v853
      %855 = vmatmul.bf16.gmra.mxu0 %v583
      %v856 = vpop.f32.mrf.mxu0
      %v857 = vadd.f32 %v480, %v856
      %v858 = vpop.f32.mrf.mxu0
      %v859 = vadd.f32 %v480, %v858
      %860 = vmatmul.bf16.gmra.mxu0 %v586
      %v861 = vpop.f32.mrf.mxu0
      %v862 = vadd.f32 %v480, %v861
      %v863 = vpop.f32.mrf.mxu0
      %v864 = vadd.f32 %v480, %v863
      %865 = vmatmul.bf16.gmra.mxu0 %v589
      %v866 = vpop.f32.mrf.mxu0
      %v867 = vadd.f32 %v480, %v866
      %v868 = vpop.f32.mrf.mxu0
      %v869 = vadd.f32 %v480, %v868
      %870 = vmatmul.bf16.gmra.mxu0 %v592
      %v871 = vpop.f32.mrf.mxu0
      %v872 = vadd.f32 %v480, %v871
      %v873 = vpop.f32.mrf.mxu0
      %v874 = vadd.f32 %v480, %v873
      %875 = vmatmul.bf16.gmra.mxu0 %v595
      %v876 = vpop.f32.mrf.mxu0
      %v877 = vadd.f32 %v480, %v876
      %v878 = vpop.f32.mrf.mxu0
      %v879 = vadd.f32 %v480, %v878
      %880 = vmatmul.bf16.gmra.mxu0 %v598
      %v881 = vpop.f32.mrf.mxu0
      %v882 = vadd.f32 %v480, %v881
      %v883 = vpop.f32.mrf.mxu0
      %v884 = vadd.f32 %v480, %v883
      %885 = vmatmul.bf16.gmra.mxu0 %v601
      %v886 = vpop.f32.mrf.mxu0
      %v887 = vadd.f32 %v480, %v886
      %v888 = vpop.f32.mrf.mxu0
      %v889 = vadd.f32 %v480, %v888
      %890 = vmatmul.bf16.gmra.mxu0 %v604
      %v891 = vpop.f32.mrf.mxu0
      %v892 = vadd.f32 %v480, %v891
      %v893 = vpop.f32.mrf.mxu0
      %v894 = vadd.f32 %v480, %v893
      %895 = vmatmul.bf16.gmra.mxu0 %v607
      %v896 = vpop.f32.mrf.mxu0
      %v897 = vadd.f32 %v480, %v896
      %v898 = vpop.f32.mrf.mxu0
      %v899 = vadd.f32 %v480, %v898
      %900 = vmatmul.bf16.gmra.mxu0 %v610
      %v901 = vpop.f32.mrf.mxu0
      %v902 = vadd.f32 %v480, %v901
      %v903 = vpop.f32.mrf.mxu0
      %v904 = vadd.f32 %v480, %v903
      %905 = vmatmul.bf16.gmra.mxu0 %v613
      %v906 = vpop.f32.mrf.mxu0
      %v907 = vadd.f32 %v480, %v906
      %v908 = vpop.f32.mrf.mxu0
      %v909 = vadd.f32 %v480, %v908
      %910 = vmatmul.bf16.gmra.mxu0 %v616
      %v911 = vpop.f32.mrf.mxu0
      %v912 = vadd.f32 %v480, %v911
      %v913 = vpop.f32.mrf.mxu0
      %v914 = vadd.f32 %v480, %v913
      %915 = vmatmul.bf16.gmra.mxu0 %v619
      %v916 = vpop.f32.mrf.mxu0
      %v917 = vadd.f32 %v480, %v916
      %v918 = vpop.f32.mrf.mxu0
      %v919 = vadd.f32 %v480, %v918
      %920 = vmatmul.bf16.gmra.mxu0 %v622
      %v921 = vpop.f32.mrf.mxu0
      %v922 = vadd.f32 %v480, %v921
      %v923 = vpop.f32.mrf.mxu0
      %v924 = vadd.f32 %v480, %v923
      %925 = vmatmul.bf16.gmra.mxu0 %v625
      %v926 = vpop.f32.mrf.mxu0
      %v927 = vadd.f32 %v480, %v926
      %v928 = vpop.f32.mrf.mxu0
      %v929 = vadd.f32 %v480, %v928
      %930 = vmatmul.bf16.gmra.mxu0 %v628
      %v931 = vpop.f32.mrf.mxu0
      %v932 = vadd.f32 %v480, %v931
      %v933 = vpop.f32.mrf.mxu0
      %v934 = vadd.f32 %v480, %v933
      %935 = vmatmul.bf16.gmra.mxu0 %v631
      %v936 = vpop.f32.mrf.mxu0
      %v937 = vadd.f32 %v480, %v936
      %v938 = vpop.f32.mrf.mxu0
      %v939 = vadd.f32 %v480, %v938
      %940 = vmatmul.bf16.gmra.mxu0 %v634
      %v941 = vpop.f32.mrf.mxu0
      %v942 = vadd.f32 %v480, %v941
      %v943 = vpop.f32.mrf.mxu0
      %v944 = vadd.f32 %v480, %v943
      %945 = vmatmul.bf16.gmra.mxu0 %v637
      %v946 = vpop.f32.mrf.mxu0
      %v947 = vadd.f32 %v480, %v946
      %v948 = vpop.f32.mrf.mxu0
      %v949 = vadd.f32 %v480, %v948
      %950 = vmatmul.bf16.gmra.mxu0 %v640
      %v951 = vpop.f32.mrf.mxu0
      %v952 = vadd.f32 %v480, %v951
      %v953 = vpop.f32.mrf.mxu0
      %v954 = vadd.f32 %v480, %v953
      %955 = vmatmul.bf16.gmra.mxu0 %v643
      %v956 = vpop.f32.mrf.mxu0
      %v957 = vadd.f32 %v480, %v956
      %v958 = vpop.f32.mrf.mxu0
      %v959 = vadd.f32 %v480, %v958
      %960 = vmatmul.bf16.gmra.mxu0 %v646
      %v961 = vpop.f32.mrf.mxu0
      %v962 = vadd.f32 %v480, %v961
      %v963 = vpop.f32.mrf.mxu0
      %v964 = vadd.f32 %v480, %v963
      %965 = vmatmul.bf16.gmra.mxu0 %v649
      %v966 = vpop.f32.mrf.mxu0
      %v967 = vadd.f32 %v480, %v966
      %v968 = vpop.f32.mrf.mxu0
      %v969 = vadd.f32 %v480, %v968
      %970 = vmatmul.bf16.gmra.mxu0 %v652
      %v971 = vpop.f32.mrf.mxu0
      %v972 = vadd.f32 %v480, %v971
      %v973 = vpop.f32.mrf.mxu0
      %v974 = vadd.f32 %v480, %v973
      %975 = vmatmul.bf16.gmra.mxu0 %v655
      %v976 = vpop.f32.mrf.mxu0
      %v977 = vadd.f32 %v480, %v976
      %v978 = vpop.f32.mrf.mxu0
      %v979 = vadd.f32 %v480, %v978
      %980 = vmatmul.bf16.gmra.mxu0 %v658
      %v981 = vpop.f32.mrf.mxu0
      %v982 = vadd.f32 %v480, %v981
      %v983 = vpop.f32.mrf.mxu0
      %v984 = vadd.f32 %v480, %v983
      %985 = vmatmul.bf16.gmra.mxu0 %v661
      %v986 = vpop.f32.mrf.mxu0
      %v987 = vadd.f32 %v480, %v986
      %v988 = vpop.f32.mrf.mxu0
      %v989 = vadd.f32 %v480, %v988
      %990 = vmatmul.bf16.gmra.mxu0 %v664
      %v991 = vpop.f32.mrf.mxu0
      %v992 = vadd.f32 %v480, %v991
      %v993 = vpop.f32.mrf.mxu0
      %v994 = vadd.f32 %v480, %v993
      %995 = vmatmul.bf16.gmra.mxu0 %v667
      %v996 = vpop.f32.mrf.mxu0
      %v997 = vadd.f32 %v480, %v996
      %v998 = vpop.f32.mrf.mxu0
      %v999 = vadd.f32 %v480, %v998
      %1000 = vmatmul.bf16.gmra.mxu0 %v670
      %v1001 = vpop.f32.mrf.mxu0
      %v1002 = vadd.f32 %v480, %v1001
      %v1003 = vpop.f32.mrf.mxu0
      %v1004 = vadd.f32 %v480, %v1003
      %1005 = vmatmul.bf16.gmra.mxu0 %v673
      %v1006 = vpop.f32.mrf.mxu0
      %v1007 = vadd.f32 %v480, %v1006
      %v1008 = vpop.f32.mrf.mxu0
      %v1009 = vadd.f32 %v480, %v1008
      %1010 = vmatmul.bf16.gmra.mxu0 %v676
      %v1011 = vpop.f32.mrf.mxu0
      %v1012 = vadd.f32 %v480, %v1011
      %v1013 = vpop.f32.mrf.mxu0
      %1014 = vdwg.mxu0
      %v1015 = vtanh.pop %v692
      %v1016 = vtanh.pop %v694
      %v1017 = vtanh.pop %v697
      %v1018 = vtanh.pop %v699
      %v1019 = vtanh.pop %v702
      %v1020 = vtanh.pop %v704
      %v1021 = vtanh.pop %v707
      %v1022 = vtanh.pop %v709
      %v1023 = vtanh.pop %v712
      %v1024 = vtanh.pop %v714
      %v1025 = vtanh.pop %v717
      %v1026 = vtanh.pop %v719
      %v1027 = vtanh.pop %v722
      %v1028 = vtanh.pop %v724
      %v1029 = vtanh.pop %v727
      %v1030 = vtanh.pop %v729
      %v1031 = vtanh.pop %v732
      %v1032 = vtanh.pop %v734
      %v1033 = vtanh.pop %v737
      %v1034 = vtanh.pop %v739
      %v1035 = vtanh.pop %v742
      %v1036 = vtanh.pop %v744
      %v1037 = vtanh.pop %v747
      %v1038 = vtanh.pop %v749
      %v1039 = vtanh.pop %v752
      %v1040 = vtanh.pop %v754
      %v1041 = vtanh.pop %v757
      %v1042 = vtanh.pop %v759
      %v1043 = vtanh.pop %v762
      %v1044 = vtanh.pop %v764
      %v1045 = vtanh.pop %v767
      %v1046 = vtanh.pop %v769
      %v1047 = vtanh.pop %v772
      %v1048 = vtanh.pop %v774
      %v1049 = vtanh.pop %v777
      %v1050 = vtanh.pop %v779
      %v1051 = vtanh.pop %v782
      %v1052 = vtanh.pop %v784
      %v1053 = vtanh.pop %v787
      %v1054 = vtanh.pop %v789
      %v1055 = vtanh.pop %v792
      %v1056 = vtanh.pop %v794
      %v1057 = vtanh.pop %v797
      %v1058 = vtanh.pop %v799
      %v1059 = vtanh.pop %v802
      %v1060 = vtanh.pop %v804
      %v1061 = vtanh.pop %v807
      %v1062 = vtanh.pop %v809
      %v1063 = vtanh.pop %v812
      %v1064 = vtanh.pop %v814
      %v1065 = vtanh.pop %v817
      %v1066 = vtanh.pop %v819
      %v1067 = vtanh.pop %v822
      %v1068 = vtanh.pop %v824
      %v1069 = vtanh.pop %v827
      %v1070 = vtanh.pop %v829
      %v1071 = vtanh.pop %v832
      %v1072 = vtanh.pop %v834
      %v1073 = vtanh.pop %v837
      %v1074 = vtanh.pop %v839
      %v1075 = vtanh.pop %v842
      %v1076 = vtanh.pop %v844
      %v1077 = vtanh.pop %v847
      %v1078 = vtanh.pop %v849
      %v1079 = vtanh.pop %v852
      %v1080 = vtanh.pop %v854
      %v1081 = vtanh.pop %v857
      %v1082 = vtanh.pop %v859
      %v1083 = vtanh.pop %v862
      %v1084 = vtanh.pop %v864
      %v1085 = vtanh.pop %v867
      %v1086 = vtanh.pop %v869
      %v1087 = vtanh.pop %v872
      %v1088 = vtanh.pop %v874
      %v1089 = vtanh.pop %v877
      %v1090 = vtanh.pop %v879
      %v1091 = vtanh.pop %v882
      %v1092 = vtanh.pop %v884
      %v1093 = vtanh.pop %v887
      %v1094 = vtanh.pop %v889
      %v1095 = vtanh.pop %v892
      %v1096 = vtanh.pop %v894
      %v1097 = vtanh.pop %v897
      %v1098 = vtanh.pop %v899
      %v1099 = vtanh.pop %v902
      %v1100 = vtanh.pop %v904
      %v1101 = vtanh.pop %v907
      %v1102 = vtanh.pop %v909
      %v1103 = vtanh.pop %v912
      %v1104 = vtanh.pop %v914
      %v1105 = vtanh.pop %v917
      %v1106 = vtanh.pop %v919
      %v1107 = vtanh.pop %v922
      %v1108 = vtanh.pop %v924
      %v1109 = vtanh.pop %v927
      %v1110 = vtanh.pop %v929
      %v1111 = vtanh.pop %v932
      %v1112 = vtanh.pop %v934
      %v1113 = vtanh.pop %v937
      %v1114 = vtanh.pop %v939
      %v1115 = vtanh.pop %v942
      %v1116 = vtanh.pop %v944
      %v1117 = vtanh.pop %v947
      %v1118 = vtanh.pop %v949
      %v1119 = vtanh.pop %v952
      %v1120 = vtanh.pop %v954
      %v1121 = vtanh.pop %v957
      %v1122 = vtanh.pop %v959
      %v1123 = vtanh.pop %v962
      %v1124 = vtanh.pop %v964
      %v1125 = vtanh.pop %v967
      %v1126 = vtanh.pop %v969
      %v1127 = vtanh.pop %v972
      %v1128 = vtanh.pop %v974
      %v1129 = vtanh.pop %v977
      %v1130 = vtanh.pop %v979
      %v1131 = vtanh.pop %v982
      %v1132 = vtanh.pop %v984
      %v1133 = vtanh.pop %v987
      %v1134 = vtanh.pop %v989
      %v1135 = vtanh.pop %v992
      %v1136 = vtanh.pop %v994
      %v1137 = vtanh.pop %v997
      %v1138 = vtanh.pop %v999
      %v1139 = vtanh.pop %v1002
      %v1140 = vtanh.pop %v1004
      %v1141 = vtanh.pop %v1007
      %v1142 = vtanh.pop %v1009
      %v1143 = vtanh.pop %v1012
      %v1144 = vpack.c.bf16 %v1016, %v1015
      %v1145 = vpack.c.bf16 %v1018, %v1017
      %v1146 = vpack.c.bf16 %v1020, %v1019
      %v1147 = vpack.c.bf16 %v1022, %v1021
      %v1148 = vpack.c.bf16 %v1024, %v1023
      %v1149 = vpack.c.bf16 %v1026, %v1025
      %v1150 = vpack.c.bf16 %v1028, %v1027
      %v1151 = vpack.c.bf16 %v1030, %v1029
      %v1152 = vpack.c.bf16 %v1032, %v1031
      %v1153 = vpack.c.bf16 %v1034, %v1033
      %v1154 = vpack.c.bf16 %v1036, %v1035
      %v1155 = vpack.c.bf16 %v1038, %v1037
      %v1156 = vpack.c.bf16 %v1040, %v1039
      %v1157 = vpack.c.bf16 %v1042, %v1041
      %v1158 = vpack.c.bf16 %v1044, %v1043
      %v1159 = vpack.c.bf16 %v1046, %v1045
      %v1160 = vpack.c.bf16 %v1048, %v1047
      %v1161 = vpack.c.bf16 %v1050, %v1049
      %v1162 = vpack.c.bf16 %v1052, %v1051
      %v1163 = vpack.c.bf16 %v1054, %v1053
      %v1164 = vpack.c.bf16 %v1056, %v1055
      %v1165 = vpack.c.bf16 %v1058, %v1057
      %v1166 = vpack.c.bf16 %v1060, %v1059
      %v1167 = vpack.c.bf16 %v1062, %v1061
      %v1168 = vpack.c.bf16 %v1064, %v1063
      %v1169 = vpack.c.bf16 %v1066, %v1065
      %v1170 = vpack.c.bf16 %v1068, %v1067
      %v1171 = vpack.c.bf16 %v1070, %v1069
      %v1172 = vpack.c.bf16 %v1072, %v1071
      %v1173 = vpack.c.bf16 %v1074, %v1073
      %v1174 = vpack.c.bf16 %v1076, %v1075
      %v1175 = vpack.c.bf16 %v1078, %v1077
      %v1176 = vpack.c.bf16 %v1080, %v1079
      %v1177 = vpack.c.bf16 %v1082, %v1081
      %v1178 = vpack.c.bf16 %v1084, %v1083
      %v1179 = vpack.c.bf16 %v1086, %v1085
      %v1180 = vpack.c.bf16 %v1088, %v1087
      %v1181 = vpack.c.bf16 %v1090, %v1089
      %v1182 = vpack.c.bf16 %v1092, %v1091
      %v1183 = vpack.c.bf16 %v1094, %v1093
      %v1184 = vpack.c.bf16 %v1096, %v1095
      %v1185 = vpack.c.bf16 %v1098, %v1097
      %v1186 = vpack.c.bf16 %v1100, %v1099
      %v1187 = vpack.c.bf16 %v1102, %v1101
      %v1188 = vpack.c.bf16 %v1104, %v1103
      %v1189 = vpack.c.bf16 %v1106, %v1105
      %v1190 = vpack.c.bf16 %v1108, %v1107
      %v1191 = vpack.c.bf16 %v1110, %v1109
      %v1192 = vpack.c.bf16 %v1112, %v1111
      %v1193 = vpack.c.bf16 %v1114, %v1113
      %v1194 = vpack.c.bf16 %v1116, %v1115
      %v1195 = vpack.c.bf16 %v1118, %v1117
      %v1196 = vpack.c.bf16 %v1120, %v1119
      %v1197 = vpack.c.bf16 %v1122, %v1121
      %v1198 = vpack.c.bf16 %v1124, %v1123
      %v1199 = vpack.c.bf16 %v1126, %v1125
      %v1200 = vpack.c.bf16 %v1128, %v1127
      %v1201 = vpack.c.bf16 %v1130, %v1129
      %v1202 = vpack.c.bf16 %v1132, %v1131
      %v1203 = vpack.c.bf16 %v1134, %v1133
      %v1204 = vpack.c.bf16 %v1136, %v1135
      %v1205 = vpack.c.bf16 %v1138, %v1137
      %v1206 = vpack.c.bf16 %v1140, %v1139
      %v1207 = vpack.c.bf16 %v1142, %v1141
      %v1208 = vpack.c.bf16 %v1143, %v1143
      %v1209 = vld [vmem:[%s3] sm:$0xf]
      %v1210 = vld [vmem:[%s3 + $0x4] sm:$0xf]
      %v1211 = vld [vmem:[%s3 + $0x8] sm:$0xf]
      %v1212 = vld [vmem:[%s3 + $0xc] sm:$0xf]
      %v1213 = vld [vmem:[%s3 + $0x10] sm:$0xf]
      %v1214 = vld [vmem:[%s3 + $0x14] sm:$0xf]
      %v1215 = vld [vmem:[%s3 + $0x18] sm:$0xf]
      %v1216 = vld [vmem:[%s3 + $0x1c] sm:$0xf]
      %v1217 = vld [vmem:[%s4] sm:$0x1]
      %v1219 = vperm.slane %v1217, 0
      %v1229 = vunpack.c.l.b16 %v1209
      %v1230 = vunpack.c.l.b16 %v1210
      %v1231 = vunpack.c.l.b16 %v1211
      %v1232 = vunpack.c.l.b16 %v1212
      %v1233 = vunpack.c.l.b16 %v1213
      %v1234 = vunpack.c.l.b16 %v1214
      %v1235 = vunpack.c.l.b16 %v1215
      %v1236 = vunpack.c.l.b16 %v1216
      %v1237 = vpack.c.b16 %v1230, %v1229
      %v1238 = vpack.c.b16 %v1232, %v1231
      %v1239 = vpack.c.b16 %v1234, %v1233
      %v1240 = vpack.c.b16 %v1236, %v1235
      %vm1245 = vcmask 523264
      %v1247 = vsel %vm1245, %v1144, 0
      %v1250 = vsel %vm1245, %v1145, 0
      %v1253 = vsel %vm1245, %v1146, 0
      %v1256 = vsel %vm1245, %v1147, 0
      %v1259 = vsel %vm1245, %v1148, 0
      %v1262 = vsel %vm1245, %v1149, 0
      %v1265 = vsel %vm1245, %v1150, 0
      %v1268 = vsel %vm1245, %v1151, 0
      %v1271 = vsel %vm1245, %v1152, 0
      %v1274 = vsel %vm1245, %v1153, 0
      %v1277 = vsel %vm1245, %v1154, 0
      %v1280 = vsel %vm1245, %v1155, 0
      %v1283 = vsel %vm1245, %v1156, 0
      %v1286 = vsel %vm1245, %v1157, 0
      %v1289 = vsel %vm1245, %v1158, 0
      %v1292 = vsel %vm1245, %v1159, 0
      %v1295 = vsel %vm1245, %v1160, 0
      %v1298 = vsel %vm1245, %v1161, 0
      %v1301 = vsel %vm1245, %v1162, 0
      %v1304 = vsel %vm1245, %v1163, 0
      %v1307 = vsel %vm1245, %v1164, 0
      %v1310 = vsel %vm1245, %v1165, 0
      %v1313 = vsel %vm1245, %v1166, 0
      %v1316 = vsel %vm1245, %v1167, 0
      %v1319 = vsel %vm1245, %v1168, 0
      %v1322 = vsel %vm1245, %v1169, 0
      %v1325 = vsel %vm1245, %v1170, 0
      %v1328 = vsel %vm1245, %v1171, 0
      %v1331 = vsel %vm1245, %v1172, 0
      %v1334 = vsel %vm1245, %v1173, 0
      %v1337 = vsel %vm1245, %v1174, 0
      %v1340 = vsel %vm1245, %v1175, 0
      %v1343 = vsel %vm1245, %v1176, 0
      %v1346 = vsel %vm1245, %v1177, 0
      %v1349 = vsel %vm1245, %v1178, 0
      %v1352 = vsel %vm1245, %v1179, 0
      %v1355 = vsel %vm1245, %v1180, 0
      %v1358 = vsel %vm1245, %v1181, 0
      %v1361 = vsel %vm1245, %v1182, 0
      %v1364 = vsel %vm1245, %v1183, 0
      %v1367 = vsel %vm1245, %v1184, 0
      %v1370 = vsel %vm1245, %v1185, 0
      %v1373 = vsel %vm1245, %v1186, 0
      %v1376 = vsel %vm1245, %v1187, 0
      %v1379 = vsel %vm1245, %v1188, 0
      %v1382 = vsel %vm1245, %v1189, 0
      %v1385 = vsel %vm1245, %v1190, 0
      %v1388 = vsel %vm1245, %v1191, 0
      %v1391 = vsel %vm1245, %v1192, 0
      %v1394 = vsel %vm1245, %v1193, 0
      %v1397 = vsel %vm1245, %v1194, 0
      %v1400 = vsel %vm1245, %v1195, 0
      %v1403 = vsel %vm1245, %v1196, 0
      %v1406 = vsel %vm1245, %v1197, 0
      %v1409 = vsel %vm1245, %v1198, 0
      %v1412 = vsel %vm1245, %v1199, 0
      %v1415 = vsel %vm1245, %v1200, 0
      %v1418 = vsel %vm1245, %v1201, 0
      %v1421 = vsel %vm1245, %v1202, 0
      %v1424 = vsel %vm1245, %v1203, 0
      %v1427 = vsel %vm1245, %v1204, 0
      %v1430 = vsel %vm1245, %v1205, 0
      %v1433 = vsel %vm1245, %v1206, 0
      %v1436 = vsel %vm1245, %v1207, 0
      %v1439 = vsel %vm1245, %v1208, 0
      %1441 = vmatpush.bf16.msra.mxu0 0
      %1442 = vmatpush.bf16.msra.mxu0 0
      %1443 = vmatpush.bf16.msra.mxu0 0
      %1444 = vmatpush.bf16.msra.mxu0 0
      %1445 = vmatpush.bf16.msra.mxu0 %v1240
      %1446 = vmatpush.bf16.msra.mxu0 %v1239
      %1447 = vmatpush.bf16.msra.mxu0 %v1238
      %1448 = vmatpush.bf16.msra.mxu0 %v1237
      %1449 = vmatmul.bf16.gmra.mxu0 %v1247
      %v1450 = vpop.f32.mrf.mxu0
      %v1451 = vadd.f32 %v1219, %v1450
      %v1452 = vpop.f32.mrf.mxu0
      %v1453 = vadd.f32 %v1219, %v1452
      %1454 = vmatmul.bf16.gmra.mxu0 %v1250
      %v1455 = vpop.f32.mrf.mxu0
      %v1456 = vadd.f32 %v1219, %v1455
      %v1457 = vpop.f32.mrf.mxu0
      %v1458 = vadd.f32 %v1219, %v1457
      %1459 = vmatmul.bf16.gmra.mxu0 %v1253
      %v1460 = vpop.f32.mrf.mxu0
      %v1461 = vadd.f32 %v1219, %v1460
      %v1462 = vpop.f32.mrf.mxu0
      %v1463 = vadd.f32 %v1219, %v1462
      %1464 = vmatmul.bf16.gmra.mxu0 %v1256
      %v1465 = vpop.f32.mrf.mxu0
      %v1466 = vadd.f32 %v1219, %v1465
      %v1467 = vpop.f32.mrf.mxu0
      %v1468 = vadd.f32 %v1219, %v1467
      %1469 = vmatmul.bf16.gmra.mxu0 %v1259
      %v1470 = vpop.f32.mrf.mxu0
      %v1471 = vadd.f32 %v1219, %v1470
      %v1472 = vpop.f32.mrf.mxu0
      %v1473 = vadd.f32 %v1219, %v1472
      %1474 = vmatmul.bf16.gmra.mxu0 %v1262
      %v1475 = vpop.f32.mrf.mxu0
      %v1476 = vadd.f32 %v1219, %v1475
      %v1477 = vpop.f32.mrf.mxu0
      %v1478 = vadd.f32 %v1219, %v1477
      %1479 = vmatmul.bf16.gmra.mxu0 %v1265
      %v1480 = vpop.f32.mrf.mxu0
      %v1481 = vadd.f32 %v1219, %v1480
      %v1482 = vpop.f32.mrf.mxu0
      %v1483 = vadd.f32 %v1219, %v1482
      %1484 = vmatmul.bf16.gmra.mxu0 %v1268
      %v1485 = vpop.f32.mrf.mxu0
      %v1486 = vadd.f32 %v1219, %v1485
      %v1487 = vpop.f32.mrf.mxu0
      %v1488 = vadd.f32 %v1219, %v1487
      %1489 = vmatmul.bf16.gmra.mxu0 %v1271
      %v1490 = vpop.f32.mrf.mxu0
      %v1491 = vadd.f32 %v1219, %v1490
      %v1492 = vpop.f32.mrf.mxu0
      %v1493 = vadd.f32 %v1219, %v1492
      %1494 = vmatmul.bf16.gmra.mxu0 %v1274
      %v1495 = vpop.f32.mrf.mxu0
      %v1496 = vadd.f32 %v1219, %v1495
      %v1497 = vpop.f32.mrf.mxu0
      %v1498 = vadd.f32 %v1219, %v1497
      %1499 = vmatmul.bf16.gmra.mxu0 %v1277
      %v1500 = vpop.f32.mrf.mxu0
      %v1501 = vadd.f32 %v1219, %v1500
      %v1502 = vpop.f32.mrf.mxu0
      %v1503 = vadd.f32 %v1219, %v1502
      %1504 = vmatmul.bf16.gmra.mxu0 %v1280
      %v1505 = vpop.f32.mrf.mxu0
      %v1506 = vadd.f32 %v1219, %v1505
      %v1507 = vpop.f32.mrf.mxu0
      %v1508 = vadd.f32 %v1219, %v1507
      %1509 = vmatmul.bf16.gmra.mxu0 %v1283
      %v1510 = vpop.f32.mrf.mxu0
      %v1511 = vadd.f32 %v1219, %v1510
      %v1512 = vpop.f32.mrf.mxu0
      %v1513 = vadd.f32 %v1219, %v1512
      %1514 = vmatmul.bf16.gmra.mxu0 %v1286
      %v1515 = vpop.f32.mrf.mxu0
      %v1516 = vadd.f32 %v1219, %v1515
      %v1517 = vpop.f32.mrf.mxu0
      %v1518 = vadd.f32 %v1219, %v1517
      %1519 = vmatmul.bf16.gmra.mxu0 %v1289
      %v1520 = vpop.f32.mrf.mxu0
      %v1521 = vadd.f32 %v1219, %v1520
      %v1522 = vpop.f32.mrf.mxu0
      %v1523 = vadd.f32 %v1219, %v1522
      %1524 = vmatmul.bf16.gmra.mxu0 %v1292
      %v1525 = vpop.f32.mrf.mxu0
      %v1526 = vadd.f32 %v1219, %v1525
      %v1527 = vpop.f32.mrf.mxu0
      %v1528 = vadd.f32 %v1219, %v1527
      %1529 = vmatmul.bf16.gmra.mxu0 %v1295
      %v1530 = vpop.f32.mrf.mxu0
      %v1531 = vadd.f32 %v1219, %v1530
      %v1532 = vpop.f32.mrf.mxu0
      %v1533 = vadd.f32 %v1219, %v1532
      %1534 = vmatmul.bf16.gmra.mxu0 %v1298
      %v1535 = vpop.f32.mrf.mxu0
      %v1536 = vadd.f32 %v1219, %v1535
      %v1537 = vpop.f32.mrf.mxu0
      %v1538 = vadd.f32 %v1219, %v1537
      %1539 = vmatmul.bf16.gmra.mxu0 %v1301
      %v1540 = vpop.f32.mrf.mxu0
      %v1541 = vadd.f32 %v1219, %v1540
      %v1542 = vpop.f32.mrf.mxu0
      %v1543 = vadd.f32 %v1219, %v1542
      %1544 = vmatmul.bf16.gmra.mxu0 %v1304
      %v1545 = vpop.f32.mrf.mxu0
      %v1546 = vadd.f32 %v1219, %v1545
      %v1547 = vpop.f32.mrf.mxu0
      %v1548 = vadd.f32 %v1219, %v1547
      %1549 = vmatmul.bf16.gmra.mxu0 %v1307
      %v1550 = vpop.f32.mrf.mxu0
      %v1551 = vadd.f32 %v1219, %v1550
      %v1552 = vpop.f32.mrf.mxu0
      %v1553 = vadd.f32 %v1219, %v1552
      %1554 = vmatmul.bf16.gmra.mxu0 %v1310
      %v1555 = vpop.f32.mrf.mxu0
      %v1556 = vadd.f32 %v1219, %v1555
      %v1557 = vpop.f32.mrf.mxu0
      %v1558 = vadd.f32 %v1219, %v1557
      %1559 = vmatmul.bf16.gmra.mxu0 %v1313
      %v1560 = vpop.f32.mrf.mxu0
      %v1561 = vadd.f32 %v1219, %v1560
      %v1562 = vpop.f32.mrf.mxu0
      %v1563 = vadd.f32 %v1219, %v1562
      %1564 = vmatmul.bf16.gmra.mxu0 %v1316
      %v1565 = vpop.f32.mrf.mxu0
      %v1566 = vadd.f32 %v1219, %v1565
      %v1567 = vpop.f32.mrf.mxu0
      %v1568 = vadd.f32 %v1219, %v1567
      %1569 = vmatmul.bf16.gmra.mxu0 %v1319
      %v1570 = vpop.f32.mrf.mxu0
      %v1571 = vadd.f32 %v1219, %v1570
      %v1572 = vpop.f32.mrf.mxu0
      %v1573 = vadd.f32 %v1219, %v1572
      %1574 = vmatmul.bf16.gmra.mxu0 %v1322
      %v1575 = vpop.f32.mrf.mxu0
      %v1576 = vadd.f32 %v1219, %v1575
      %v1577 = vpop.f32.mrf.mxu0
      %v1578 = vadd.f32 %v1219, %v1577
      %1579 = vmatmul.bf16.gmra.mxu0 %v1325
      %v1580 = vpop.f32.mrf.mxu0
      %v1581 = vadd.f32 %v1219, %v1580
      %v1582 = vpop.f32.mrf.mxu0
      %v1583 = vadd.f32 %v1219, %v1582
      %1584 = vmatmul.bf16.gmra.mxu0 %v1328
      %v1585 = vpop.f32.mrf.mxu0
      %v1586 = vadd.f32 %v1219, %v1585
      %v1587 = vpop.f32.mrf.mxu0
      %v1588 = vadd.f32 %v1219, %v1587
      %1589 = vmatmul.bf16.gmra.mxu0 %v1331
      %v1590 = vpop.f32.mrf.mxu0
      %v1591 = vadd.f32 %v1219, %v1590
      %v1592 = vpop.f32.mrf.mxu0
      %v1593 = vadd.f32 %v1219, %v1592
      %1594 = vmatmul.bf16.gmra.mxu0 %v1334
      %v1595 = vpop.f32.mrf.mxu0
      %v1596 = vadd.f32 %v1219, %v1595
      %v1597 = vpop.f32.mrf.mxu0
      %v1598 = vadd.f32 %v1219, %v1597
      %1599 = vmatmul.bf16.gmra.mxu0 %v1337
      %v1600 = vpop.f32.mrf.mxu0
      %v1601 = vadd.f32 %v1219, %v1600
      %v1602 = vpop.f32.mrf.mxu0
      %v1603 = vadd.f32 %v1219, %v1602
      %1604 = vmatmul.bf16.gmra.mxu0 %v1340
      %v1605 = vpop.f32.mrf.mxu0
      %v1606 = vadd.f32 %v1219, %v1605
      %v1607 = vpop.f32.mrf.mxu0
      %v1608 = vadd.f32 %v1219, %v1607
      %1609 = vmatmul.bf16.gmra.mxu0 %v1343
      %v1610 = vpop.f32.mrf.mxu0
      %v1611 = vadd.f32 %v1219, %v1610
      %v1612 = vpop.f32.mrf.mxu0
      %v1613 = vadd.f32 %v1219, %v1612
      %1614 = vmatmul.bf16.gmra.mxu0 %v1346
      %v1615 = vpop.f32.mrf.mxu0
      %v1616 = vadd.f32 %v1219, %v1615
      %v1617 = vpop.f32.mrf.mxu0
      %v1618 = vadd.f32 %v1219, %v1617
      %1619 = vmatmul.bf16.gmra.mxu0 %v1349
      %v1620 = vpop.f32.mrf.mxu0
      %v1621 = vadd.f32 %v1219, %v1620
      %v1622 = vpop.f32.mrf.mxu0
      %v1623 = vadd.f32 %v1219, %v1622
      %1624 = vmatmul.bf16.gmra.mxu0 %v1352
      %v1625 = vpop.f32.mrf.mxu0
      %v1626 = vadd.f32 %v1219, %v1625
      %v1627 = vpop.f32.mrf.mxu0
      %v1628 = vadd.f32 %v1219, %v1627
      %1629 = vmatmul.bf16.gmra.mxu0 %v1355
      %v1630 = vpop.f32.mrf.mxu0
      %v1631 = vadd.f32 %v1219, %v1630
      %v1632 = vpop.f32.mrf.mxu0
      %v1633 = vadd.f32 %v1219, %v1632
      %1634 = vmatmul.bf16.gmra.mxu0 %v1358
      %v1635 = vpop.f32.mrf.mxu0
      %v1636 = vadd.f32 %v1219, %v1635
      %v1637 = vpop.f32.mrf.mxu0
      %v1638 = vadd.f32 %v1219, %v1637
      %1639 = vmatmul.bf16.gmra.mxu0 %v1361
      %v1640 = vpop.f32.mrf.mxu0
      %v1641 = vadd.f32 %v1219, %v1640
      %v1642 = vpop.f32.mrf.mxu0
      %v1643 = vadd.f32 %v1219, %v1642
      %1644 = vmatmul.bf16.gmra.mxu0 %v1364
      %v1645 = vpop.f32.mrf.mxu0
      %v1646 = vadd.f32 %v1219, %v1645
      %v1647 = vpop.f32.mrf.mxu0
      %v1648 = vadd.f32 %v1219, %v1647
      %1649 = vmatmul.bf16.gmra.mxu0 %v1367
      %v1650 = vpop.f32.mrf.mxu0
      %v1651 = vadd.f32 %v1219, %v1650
      %v1652 = vpop.f32.mrf.mxu0
      %v1653 = vadd.f32 %v1219, %v1652
      %1654 = vmatmul.bf16.gmra.mxu0 %v1370
      %v1655 = vpop.f32.mrf.mxu0
      %v1656 = vadd.f32 %v1219, %v1655
      %v1657 = vpop.f32.mrf.mxu0
      %v1658 = vadd.f32 %v1219, %v1657
      %1659 = vmatmul.bf16.gmra.mxu0 %v1373
      %v1660 = vpop.f32.mrf.mxu0
      %v1661 = vadd.f32 %v1219, %v1660
      %v1662 = vpop.f32.mrf.mxu0
      %v1663 = vadd.f32 %v1219, %v1662
      %1664 = vmatmul.bf16.gmra.mxu0 %v1376
      %v1665 = vpop.f32.mrf.mxu0
      %v1666 = vadd.f32 %v1219, %v1665
      %v1667 = vpop.f32.mrf.mxu0
      %v1668 = vadd.f32 %v1219, %v1667
      %1669 = vmatmul.bf16.gmra.mxu0 %v1379
      %v1670 = vpop.f32.mrf.mxu0
      %v1671 = vadd.f32 %v1219, %v1670
      %v1672 = vpop.f32.mrf.mxu0
      %v1673 = vadd.f32 %v1219, %v1672
      %1674 = vmatmul.bf16.gmra.mxu0 %v1382
      %v1675 = vpop.f32.mrf.mxu0
      %v1676 = vadd.f32 %v1219, %v1675
      %v1677 = vpop.f32.mrf.mxu0
      %v1678 = vadd.f32 %v1219, %v1677
      %1679 = vmatmul.bf16.gmra.mxu0 %v1385
      %v1680 = vpop.f32.mrf.mxu0
      %v1681 = vadd.f32 %v1219, %v1680
      %v1682 = vpop.f32.mrf.mxu0
      %v1683 = vadd.f32 %v1219, %v1682
      %1684 = vmatmul.bf16.gmra.mxu0 %v1388
      %v1685 = vpop.f32.mrf.mxu0
      %v1686 = vadd.f32 %v1219, %v1685
      %v1687 = vpop.f32.mrf.mxu0
      %v1688 = vadd.f32 %v1219, %v1687
      %1689 = vmatmul.bf16.gmra.mxu0 %v1391
      %v1690 = vpop.f32.mrf.mxu0
      %v1691 = vadd.f32 %v1219, %v1690
      %v1692 = vpop.f32.mrf.mxu0
      %v1693 = vadd.f32 %v1219, %v1692
      %1694 = vmatmul.bf16.gmra.mxu0 %v1394
      %v1695 = vpop.f32.mrf.mxu0
      %v1696 = vadd.f32 %v1219, %v1695
      %v1697 = vpop.f32.mrf.mxu0
      %v1698 = vadd.f32 %v1219, %v1697
      %1699 = vmatmul.bf16.gmra.mxu0 %v1397
      %v1700 = vpop.f32.mrf.mxu0
      %v1701 = vadd.f32 %v1219, %v1700
      %v1702 = vpop.f32.mrf.mxu0
      %v1703 = vadd.f32 %v1219, %v1702
      %1704 = vmatmul.bf16.gmra.mxu0 %v1400
      %v1705 = vpop.f32.mrf.mxu0
      %v1706 = vadd.f32 %v1219, %v1705
      %v1707 = vpop.f32.mrf.mxu0
      %v1708 = vadd.f32 %v1219, %v1707
      %1709 = vmatmul.bf16.gmra.mxu0 %v1403
      %v1710 = vpop.f32.mrf.mxu0
      %v1711 = vadd.f32 %v1219, %v1710
      %v1712 = vpop.f32.mrf.mxu0
      %v1713 = vadd.f32 %v1219, %v1712
      %1714 = vmatmul.bf16.gmra.mxu0 %v1406
      %v1715 = vpop.f32.mrf.mxu0
      %v1716 = vadd.f32 %v1219, %v1715
      %v1717 = vpop.f32.mrf.mxu0
      %v1718 = vadd.f32 %v1219, %v1717
      %1719 = vmatmul.bf16.gmra.mxu0 %v1409
      %v1720 = vpop.f32.mrf.mxu0
      %v1721 = vadd.f32 %v1219, %v1720
      %v1722 = vpop.f32.mrf.mxu0
      %v1723 = vadd.f32 %v1219, %v1722
      %1724 = vmatmul.bf16.gmra.mxu0 %v1412
      %v1725 = vpop.f32.mrf.mxu0
      %v1726 = vadd.f32 %v1219, %v1725
      %v1727 = vpop.f32.mrf.mxu0
      %v1728 = vadd.f32 %v1219, %v1727
      %1729 = vmatmul.bf16.gmra.mxu0 %v1415
      %v1730 = vpop.f32.mrf.mxu0
      %v1731 = vadd.f32 %v1219, %v1730
      %v1732 = vpop.f32.mrf.mxu0
      %v1733 = vadd.f32 %v1219, %v1732
      %1734 = vmatmul.bf16.gmra.mxu0 %v1418
      %v1735 = vpop.f32.mrf.mxu0
      %v1736 = vadd.f32 %v1219, %v1735
      %v1737 = vpop.f32.mrf.mxu0
      %v1738 = vadd.f32 %v1219, %v1737
      %1739 = vmatmul.bf16.gmra.mxu0 %v1421
      %v1740 = vpop.f32.mrf.mxu0
      %v1741 = vadd.f32 %v1219, %v1740
      %v1742 = vpop.f32.mrf.mxu0
      %v1743 = vadd.f32 %v1219, %v1742
      %1744 = vmatmul.bf16.gmra.mxu0 %v1424
      %v1745 = vpop.f32.mrf.mxu0
      %v1746 = vadd.f32 %v1219, %v1745
      %v1747 = vpop.f32.mrf.mxu0
      %v1748 = vadd.f32 %v1219, %v1747
      %1749 = vmatmul.bf16.gmra.mxu0 %v1427
      %v1750 = vpop.f32.mrf.mxu0
      %v1751 = vadd.f32 %v1219, %v1750
      %v1752 = vpop.f32.mrf.mxu0
      %v1753 = vadd.f32 %v1219, %v1752
      %1754 = vmatmul.bf16.gmra.mxu0 %v1430
      %v1755 = vpop.f32.mrf.mxu0
      %v1756 = vadd.f32 %v1219, %v1755
      %v1757 = vpop.f32.mrf.mxu0
      %v1758 = vadd.f32 %v1219, %v1757
      %1759 = vmatmul.bf16.gmra.mxu0 %v1433
      %v1760 = vpop.f32.mrf.mxu0
      %v1761 = vadd.f32 %v1219, %v1760
      %v1762 = vpop.f32.mrf.mxu0
      %v1763 = vadd.f32 %v1219, %v1762
      %1764 = vmatmul.bf16.gmra.mxu0 %v1436
      %v1765 = vpop.f32.mrf.mxu0
      %v1766 = vadd.f32 %v1219, %v1765
      %v1767 = vpop.f32.mrf.mxu0
      %v1768 = vadd.f32 %v1219, %v1767
      %1769 = vmatmul.bf16.gmra.mxu0 %v1439
      %v1770 = vpop.f32.mrf.mxu0
      %v1771 = vadd.f32 %v1219, %v1770
      %v1772 = vpop.f32.mrf.mxu0
      %1773 = vdwg.mxu0
      %v1774 = vtanh.pop %v1451
      %v1775 = vtanh.pop %v1453
      %v1776 = vtanh.pop %v1456
      %v1777 = vtanh.pop %v1458
      %v1778 = vtanh.pop %v1461
      %v1779 = vtanh.pop %v1463
      %v1780 = vtanh.pop %v1466
      %v1781 = vtanh.pop %v1468
      %v1782 = vtanh.pop %v1471
      %v1783 = vtanh.pop %v1473
      %v1784 = vtanh.pop %v1476
      %v1785 = vtanh.pop %v1478
      %v1786 = vtanh.pop %v1481
      %v1787 = vtanh.pop %v1483
      %v1788 = vtanh.pop %v1486
      %v1789 = vtanh.pop %v1488
      %v1790 = vtanh.pop %v1491
      %v1791 = vtanh.pop %v1493
      %v1792 = vtanh.pop %v1496
      %v1793 = vtanh.pop %v1498
      %v1794 = vtanh.pop %v1501
      %v1795 = vtanh.pop %v1503
      %v1796 = vtanh.pop %v1506
      %v1797 = vtanh.pop %v1508
      %v1798 = vtanh.pop %v1511
      %v1799 = vtanh.pop %v1513
      %v1800 = vtanh.pop %v1516
      %v1801 = vtanh.pop %v1518
      %v1802 = vtanh.pop %v1521
      %v1803 = vtanh.pop %v1523
      %v1804 = vtanh.pop %v1526
      %v1805 = vtanh.pop %v1528
      %v1806 = vtanh.pop %v1531
      %v1807 = vtanh.pop %v1533
      %v1808 = vtanh.pop %v1536
      %v1809 = vtanh.pop %v1538
      %v1810 = vtanh.pop %v1541
      %v1811 = vtanh.pop %v1543
      %v1812 = vtanh.pop %v1546
      %v1813 = vtanh.pop %v1548
      %v1814 = vtanh.pop %v1551
      %v1815 = vtanh.pop %v1553
      %v1816 = vtanh.pop %v1556
      %v1817 = vtanh.pop %v1558
      %v1818 = vtanh.pop %v1561
      %v1819 = vtanh.pop %v1563
      %v1820 = vtanh.pop %v1566
      %v1821 = vtanh.pop %v1568
      %v1822 = vtanh.pop %v1571
      %v1823 = vtanh.pop %v1573
      %v1824 = vtanh.pop %v1576
      %v1825 = vtanh.pop %v1578
      %v1826 = vtanh.pop %v1581
      %v1827 = vtanh.pop %v1583
      %v1828 = vtanh.pop %v1586
      %v1829 = vtanh.pop %v1588
      %v1830 = vtanh.pop %v1591
      %v1831 = vtanh.pop %v1593
      %v1832 = vtanh.pop %v1596
      %v1833 = vtanh.pop %v1598
      %v1834 = vtanh.pop %v1601
      %v1835 = vtanh.pop %v1603
      %v1836 = vtanh.pop %v1606
      %v1837 = vtanh.pop %v1608
      %v1838 = vtanh.pop %v1611
      %v1839 = vtanh.pop %v1613
      %v1840 = vtanh.pop %v1616
      %v1841 = vtanh.pop %v1618
      %v1842 = vtanh.pop %v1621
      %v1843 = vtanh.pop %v1623
      %v1844 = vtanh.pop %v1626
      %v1845 = vtanh.pop %v1628
      %v1846 = vtanh.pop %v1631
      %v1847 = vtanh.pop %v1633
      %v1848 = vtanh.pop %v1636
      %v1849 = vtanh.pop %v1638
      %v1850 = vtanh.pop %v1641
      %v1851 = vtanh.pop %v1643
      %v1852 = vtanh.pop %v1646
      %v1853 = vtanh.pop %v1648
      %v1854 = vtanh.pop %v1651
      %v1855 = vtanh.pop %v1653
      %v1856 = vtanh.pop %v1656
      %v1857 = vtanh.pop %v1658
      %v1858 = vtanh.pop %v1661
      %v1859 = vtanh.pop %v1663
      %v1860 = vtanh.pop %v1666
      %v1861 = vtanh.pop %v1668
      %v1862 = vtanh.pop %v1671
      %v1863 = vtanh.pop %v1673
      %v1864 = vtanh.pop %v1676
      %v1865 = vtanh.pop %v1678
      %v1866 = vtanh.pop %v1681
      %v1867 = vtanh.pop %v1683
      %v1868 = vtanh.pop %v1686
      %v1869 = vtanh.pop %v1688
      %v1870 = vtanh.pop %v1691
      %v1871 = vtanh.pop %v1693
      %v1872 = vtanh.pop %v1696
      %v1873 = vtanh.pop %v1698
      %v1874 = vtanh.pop %v1701
      %v1875 = vtanh.pop %v1703
      %v1876 = vtanh.pop %v1706
      %v1877 = vtanh.pop %v1708
      %v1878 = vtanh.pop %v1711
      %v1879 = vtanh.pop %v1713
      %v1880 = vtanh.pop %v1716
      %v1881 = vtanh.pop %v1718
      %v1882 = vtanh.pop %v1721
      %v1883 = vtanh.pop %v1723
      %v1884 = vtanh.pop %v1726
      %v1885 = vtanh.pop %v1728
      %v1886 = vtanh.pop %v1731
      %v1887 = vtanh.pop %v1733
      %v1888 = vtanh.pop %v1736
      %v1889 = vtanh.pop %v1738
      %v1890 = vtanh.pop %v1741
      %v1891 = vtanh.pop %v1743
      %v1892 = vtanh.pop %v1746
      %v1893 = vtanh.pop %v1748
      %v1894 = vtanh.pop %v1751
      %v1895 = vtanh.pop %v1753
      %v1896 = vtanh.pop %v1756
      %v1897 = vtanh.pop %v1758
      %v1898 = vtanh.pop %v1761
      %v1899 = vtanh.pop %v1763
      %v1900 = vtanh.pop %v1766
      %v1901 = vtanh.pop %v1768
      %v1902 = vtanh.pop %v1771
      %v1903 = vpack.c.bf16 %v1775, %v1774
      %v1904 = vpack.c.bf16 %v1777, %v1776
      %v1905 = vpack.c.bf16 %v1779, %v1778
      %v1906 = vpack.c.bf16 %v1781, %v1780
      %v1907 = vpack.c.bf16 %v1783, %v1782
      %v1908 = vpack.c.bf16 %v1785, %v1784
      %v1909 = vpack.c.bf16 %v1787, %v1786
      %v1910 = vpack.c.bf16 %v1789, %v1788
      %v1911 = vpack.c.bf16 %v1791, %v1790
      %v1912 = vpack.c.bf16 %v1793, %v1792
      %v1913 = vpack.c.bf16 %v1795, %v1794
      %v1914 = vpack.c.bf16 %v1797, %v1796
      %v1915 = vpack.c.bf16 %v1799, %v1798
      %v1916 = vpack.c.bf16 %v1801, %v1800
      %v1917 = vpack.c.bf16 %v1803, %v1802
      %v1918 = vpack.c.bf16 %v1805, %v1804
      %v1919 = vpack.c.bf16 %v1807, %v1806
      %v1920 = vpack.c.bf16 %v1809, %v1808
      %v1921 = vpack.c.bf16 %v1811, %v1810
      %v1922 = vpack.c.bf16 %v1813, %v1812
      %v1923 = vpack.c.bf16 %v1815, %v1814
      %v1924 = vpack.c.bf16 %v1817, %v1816
      %v1925 = vpack.c.bf16 %v1819, %v1818
      %v1926 = vpack.c.bf16 %v1821, %v1820
      %v1927 = vpack.c.bf16 %v1823, %v1822
      %v1928 = vpack.c.bf16 %v1825, %v1824
      %v1929 = vpack.c.bf16 %v1827, %v1826
      %v1930 = vpack.c.bf16 %v1829, %v1828
      %v1931 = vpack.c.bf16 %v1831, %v1830
      %v1932 = vpack.c.bf16 %v1833, %v1832
      %v1933 = vpack.c.bf16 %v1835, %v1834
      %v1934 = vpack.c.bf16 %v1837, %v1836
      %v1935 = vpack.c.bf16 %v1839, %v1838
      %v1936 = vpack.c.bf16 %v1841, %v1840
      %v1937 = vpack.c.bf16 %v1843, %v1842
      %v1938 = vpack.c.bf16 %v1845, %v1844
      %v1939 = vpack.c.bf16 %v1847, %v1846
      %v1940 = vpack.c.bf16 %v1849, %v1848
      %v1941 = vpack.c.bf16 %v1851, %v1850
      %v1942 = vpack.c.bf16 %v1853, %v1852
      %v1943 = vpack.c.bf16 %v1855, %v1854
      %v1944 = vpack.c.bf16 %v1857, %v1856
      %v1945 = vpack.c.bf16 %v1859, %v1858
      %v1946 = vpack.c.bf16 %v1861, %v1860
      %v1947 = vpack.c.bf16 %v1863, %v1862
      %v1948 = vpack.c.bf16 %v1865, %v1864
      %v1949 = vpack.c.bf16 %v1867, %v1866
      %v1950 = vpack.c.bf16 %v1869, %v1868
      %v1951 = vpack.c.bf16 %v1871, %v1870
      %v1952 = vpack.c.bf16 %v1873, %v1872
      %v1953 = vpack.c.bf16 %v1875, %v1874
      %v1954 = vpack.c.bf16 %v1877, %v1876
      %v1955 = vpack.c.bf16 %v1879, %v1878
      %v1956 = vpack.c.bf16 %v1881, %v1880
      %v1957 = vpack.c.bf16 %v1883, %v1882
      %v1958 = vpack.c.bf16 %v1885, %v1884
      %v1959 = vpack.c.bf16 %v1887, %v1886
      %v1960 = vpack.c.bf16 %v1889, %v1888
      %v1961 = vpack.c.bf16 %v1891, %v1890
      %v1962 = vpack.c.bf16 %v1893, %v1892
      %v1963 = vpack.c.bf16 %v1895, %v1894
      %v1964 = vpack.c.bf16 %v1897, %v1896
      %v1965 = vpack.c.bf16 %v1899, %v1898
      %v1966 = vpack.c.bf16 %v1901, %v1900
      %v1967 = vpack.c.bf16 %v1902, %v1902
      %v1968 = vld [vmem:[%s5] sm:$0xf]
      %v1969 = vld [vmem:[%s5 + $0x4] sm:$0xf]
      %v1970 = vld [vmem:[%s5 + $0x8] sm:$0xf]
      %v1971 = vld [vmem:[%s5 + $0xc] sm:$0xf]
      %v1972 = vld [vmem:[%s5 + $0x10] sm:$0xf]
      %v1973 = vld [vmem:[%s5 + $0x14] sm:$0xf]
      %v1974 = vld [vmem:[%s5 + $0x18] sm:$0xf]
      %v1975 = vld [vmem:[%s5 + $0x1c] sm:$0xf]
      %v1976 = vld [vmem:[%s6] sm:$0x1]
      %v1978 = vperm.slane %v1976, 0
      %v1988 = vunpack.c.l.b16 %v1968
      %v1989 = vunpack.c.l.b16 %v1969
      %v1990 = vunpack.c.l.b16 %v1970
      %v1991 = vunpack.c.l.b16 %v1971
      %v1992 = vunpack.c.l.b16 %v1972
      %v1993 = vunpack.c.l.b16 %v1973
      %v1994 = vunpack.c.l.b16 %v1974
      %v1995 = vunpack.c.l.b16 %v1975
      %v1996 = vpack.c.b16 %v1989, %v1988
      %v1997 = vpack.c.b16 %v1991, %v1990
      %v1998 = vpack.c.b16 %v1993, %v1992
      %v1999 = vpack.c.b16 %v1995, %v1994
      %v2005 = vsel %vm1245, %v1903, 0
      %v2008 = vsel %vm1245, %v1904, 0
      %v2011 = vsel %vm1245, %v1905, 0
      %v2014 = vsel %vm1245, %v1906, 0
      %v2017 = vsel %vm1245, %v1907, 0
      %v2020 = vsel %vm1245, %v1908, 0
      %v2023 = vsel %vm1245, %v1909, 0
      %v2026 = vsel %vm1245, %v1910, 0
      %v2029 = vsel %vm1245, %v1911, 0
      %v2032 = vsel %vm1245, %v1912, 0
      %v2035 = vsel %vm1245, %v1913, 0
      %v2038 = vsel %vm1245, %v1914, 0
      %v2041 = vsel %vm1245, %v1915, 0
      %v2044 = vsel %vm1245, %v1916, 0
      %v2047 = vsel %vm1245, %v1917, 0
      %v2050 = vsel %vm1245, %v1918, 0
      %v2053 = vsel %vm1245, %v1919, 0
      %v2056 = vsel %vm1245, %v1920, 0
      %v2059 = vsel %vm1245, %v1921, 0
      %v2062 = vsel %vm1245, %v1922, 0
      %v2065 = vsel %vm1245, %v1923, 0
      %v2068 = vsel %vm1245, %v1924, 0
      %v2071 = vsel %vm1245, %v1925, 0
      %v2074 = vsel %vm1245, %v1926, 0
      %v2077 = vsel %vm1245, %v1927, 0
      %v2080 = vsel %vm1245, %v1928, 0
      %v2083 = vsel %vm1245, %v1929, 0
      %v2086 = vsel %vm1245, %v1930, 0
      %v2089 = vsel %vm1245, %v1931, 0
      %v2092 = vsel %vm1245, %v1932, 0
      %v2095 = vsel %vm1245, %v1933, 0
      %v2098 = vsel %vm1245, %v1934, 0
      %v2101 = vsel %vm1245, %v1935, 0
      %v2104 = vsel %vm1245, %v1936, 0
      %v2107 = vsel %vm1245, %v1937, 0
      %v2110 = vsel %vm1245, %v1938, 0
      %v2113 = vsel %vm1245, %v1939, 0
      %v2116 = vsel %vm1245, %v1940, 0
      %v2119 = vsel %vm1245, %v1941, 0
      %v2122 = vsel %vm1245, %v1942, 0
      %v2125 = vsel %vm1245, %v1943, 0
      %v2128 = vsel %vm1245, %v1944, 0
      %v2131 = vsel %vm1245, %v1945, 0
      %v2134 = vsel %vm1245, %v1946, 0
      %v2137 = vsel %vm1245, %v1947, 0
      %v2140 = vsel %vm1245, %v1948, 0
      %v2143 = vsel %vm1245, %v1949, 0
      %v2146 = vsel %vm1245, %v1950, 0
      %v2149 = vsel %vm1245, %v1951, 0
      %v2152 = vsel %vm1245, %v1952, 0
      %v2155 = vsel %vm1245, %v1953, 0
      %v2158 = vsel %vm1245, %v1954, 0
      %v2161 = vsel %vm1245, %v1955, 0
      %v2164 = vsel %vm1245, %v1956, 0
      %v2167 = vsel %vm1245, %v1957, 0
      %v2170 = vsel %vm1245, %v1958, 0
      %v2173 = vsel %vm1245, %v1959, 0
      %v2176 = vsel %vm1245, %v1960, 0
      %v2179 = vsel %vm1245, %v1961, 0
      %v2182 = vsel %vm1245, %v1962, 0
      %v2185 = vsel %vm1245, %v1963, 0
      %v2188 = vsel %vm1245, %v1964, 0
      %v2191 = vsel %vm1245, %v1965, 0
      %v2194 = vsel %vm1245, %v1966, 0
      %v2197 = vsel %vm1245, %v1967, 0
      %2199 = vmatpush.bf16.msra.mxu0 0
      %2200 = vmatpush.bf16.msra.mxu0 0
      %2201 = vmatpush.bf16.msra.mxu0 0
      %2202 = vmatpush.bf16.msra.mxu0 0
      %2203 = vmatpush.bf16.msra.mxu0 %v1999
      %2204 = vmatpush.bf16.msra.mxu0 %v1998
      %2205 = vmatpush.bf16.msra.mxu0 %v1997
      %2206 = vmatpush.bf16.msra.mxu0 %v1996
      %2207 = vmatmul.bf16.gmra.mxu0 %v2005
      %v2208 = vpop.f32.mrf.mxu0
      %v2209 = vadd.f32 %v1978, %v2208
      %v2210 = vpop.f32.mrf.mxu0
      %v2211 = vadd.f32 %v1978, %v2210
      %2212 = vmatmul.bf16.gmra.mxu0 %v2008
      %v2213 = vpop.f32.mrf.mxu0
      %v2214 = vadd.f32 %v1978, %v2213
      %v2215 = vpop.f32.mrf.mxu0
      %v2216 = vadd.f32 %v1978, %v2215
      %2217 = vmatmul.bf16.gmra.mxu0 %v2011
      %v2218 = vpop.f32.mrf.mxu0
      %v2219 = vadd.f32 %v1978, %v2218
      %v2220 = vpop.f32.mrf.mxu0
      %v2221 = vadd.f32 %v1978, %v2220
      %2222 = vmatmul.bf16.gmra.mxu0 %v2014
      %v2223 = vpop.f32.mrf.mxu0
      %v2224 = vadd.f32 %v1978, %v2223
      %v2225 = vpop.f32.mrf.mxu0
      %v2226 = vadd.f32 %v1978, %v2225
      %2227 = vmatmul.bf16.gmra.mxu0 %v2017
      %v2228 = vpop.f32.mrf.mxu0
      %v2229 = vadd.f32 %v1978, %v2228
      %v2230 = vpop.f32.mrf.mxu0
      %v2231 = vadd.f32 %v1978, %v2230
      %2232 = vmatmul.bf16.gmra.mxu0 %v2020
      %v2233 = vpop.f32.mrf.mxu0
      %v2234 = vadd.f32 %v1978, %v2233
      %v2235 = vpop.f32.mrf.mxu0
      %v2236 = vadd.f32 %v1978, %v2235
      %2237 = vmatmul.bf16.gmra.mxu0 %v2023
      %v2238 = vpop.f32.mrf.mxu0
      %v2239 = vadd.f32 %v1978, %v2238
      %v2240 = vpop.f32.mrf.mxu0
      %v2241 = vadd.f32 %v1978, %v2240
      %2242 = vmatmul.bf16.gmra.mxu0 %v2026
      %v2243 = vpop.f32.mrf.mxu0
      %v2244 = vadd.f32 %v1978, %v2243
      %v2245 = vpop.f32.mrf.mxu0
      %v2246 = vadd.f32 %v1978, %v2245
      %2247 = vmatmul.bf16.gmra.mxu0 %v2029
      %v2248 = vpop.f32.mrf.mxu0
      %v2249 = vadd.f32 %v1978, %v2248
      %v2250 = vpop.f32.mrf.mxu0
      %v2251 = vadd.f32 %v1978, %v2250
      %2252 = vmatmul.bf16.gmra.mxu0 %v2032
      %v2253 = vpop.f32.mrf.mxu0
      %v2254 = vadd.f32 %v1978, %v2253
      %v2255 = vpop.f32.mrf.mxu0
      %v2256 = vadd.f32 %v1978, %v2255
      %2257 = vmatmul.bf16.gmra.mxu0 %v2035
      %v2258 = vpop.f32.mrf.mxu0
      %v2259 = vadd.f32 %v1978, %v2258
      %v2260 = vpop.f32.mrf.mxu0
      %v2261 = vadd.f32 %v1978, %v2260
      %2262 = vmatmul.bf16.gmra.mxu0 %v2038
      %v2263 = vpop.f32.mrf.mxu0
      %v2264 = vadd.f32 %v1978, %v2263
      %v2265 = vpop.f32.mrf.mxu0
      %v2266 = vadd.f32 %v1978, %v2265
      %2267 = vmatmul.bf16.gmra.mxu0 %v2041
      %v2268 = vpop.f32.mrf.mxu0
      %v2269 = vadd.f32 %v1978, %v2268
      %v2270 = vpop.f32.mrf.mxu0
      %v2271 = vadd.f32 %v1978, %v2270
      %2272 = vmatmul.bf16.gmra.mxu0 %v2044
      %v2273 = vpop.f32.mrf.mxu0
      %v2274 = vadd.f32 %v1978, %v2273
      %v2275 = vpop.f32.mrf.mxu0
      %v2276 = vadd.f32 %v1978, %v2275
      %2277 = vmatmul.bf16.gmra.mxu0 %v2047
      %v2278 = vpop.f32.mrf.mxu0
      %v2279 = vadd.f32 %v1978, %v2278
      %v2280 = vpop.f32.mrf.mxu0
      %v2281 = vadd.f32 %v1978, %v2280
      %2282 = vmatmul.bf16.gmra.mxu0 %v2050
      %v2283 = vpop.f32.mrf.mxu0
      %v2284 = vadd.f32 %v1978, %v2283
      %v2285 = vpop.f32.mrf.mxu0
      %v2286 = vadd.f32 %v1978, %v2285
      %2287 = vmatmul.bf16.gmra.mxu0 %v2053
      %v2288 = vpop.f32.mrf.mxu0
      %v2289 = vadd.f32 %v1978, %v2288
      %v2290 = vpop.f32.mrf.mxu0
      %v2291 = vadd.f32 %v1978, %v2290
      %2292 = vmatmul.bf16.gmra.mxu0 %v2056
      %v2293 = vpop.f32.mrf.mxu0
      %v2294 = vadd.f32 %v1978, %v2293
      %v2295 = vpop.f32.mrf.mxu0
      %v2296 = vadd.f32 %v1978, %v2295
      %2297 = vmatmul.bf16.gmra.mxu0 %v2059
      %v2298 = vpop.f32.mrf.mxu0
      %v2299 = vadd.f32 %v1978, %v2298
      %v2300 = vpop.f32.mrf.mxu0
      %v2301 = vadd.f32 %v1978, %v2300
      %2302 = vmatmul.bf16.gmra.mxu0 %v2062
      %v2303 = vpop.f32.mrf.mxu0
      %v2304 = vadd.f32 %v1978, %v2303
      %v2305 = vpop.f32.mrf.mxu0
      %v2306 = vadd.f32 %v1978, %v2305
      %2307 = vmatmul.bf16.gmra.mxu0 %v2065
      %v2308 = vpop.f32.mrf.mxu0
      %v2309 = vadd.f32 %v1978, %v2308
      %v2310 = vpop.f32.mrf.mxu0
      %v2311 = vadd.f32 %v1978, %v2310
      %2312 = vmatmul.bf16.gmra.mxu0 %v2068
      %v2313 = vpop.f32.mrf.mxu0
      %v2314 = vadd.f32 %v1978, %v2313
      %v2315 = vpop.f32.mrf.mxu0
      %v2316 = vadd.f32 %v1978, %v2315
      %2317 = vmatmul.bf16.gmra.mxu0 %v2071
      %v2318 = vpop.f32.mrf.mxu0
      %v2319 = vadd.f32 %v1978, %v2318
      %v2320 = vpop.f32.mrf.mxu0
      %v2321 = vadd.f32 %v1978, %v2320
      %2322 = vmatmul.bf16.gmra.mxu0 %v2074
      %v2323 = vpop.f32.mrf.mxu0
      %v2324 = vadd.f32 %v1978, %v2323
      %v2325 = vpop.f32.mrf.mxu0
      %v2326 = vadd.f32 %v1978, %v2325
      %2327 = vmatmul.bf16.gmra.mxu0 %v2077
      %v2328 = vpop.f32.mrf.mxu0
      %v2329 = vadd.f32 %v1978, %v2328
      %v2330 = vpop.f32.mrf.mxu0
      %v2331 = vadd.f32 %v1978, %v2330
      %2332 = vmatmul.bf16.gmra.mxu0 %v2080
      %v2333 = vpop.f32.mrf.mxu0
      %v2334 = vadd.f32 %v1978, %v2333
      %v2335 = vpop.f32.mrf.mxu0
      %v2336 = vadd.f32 %v1978, %v2335
      %2337 = vmatmul.bf16.gmra.mxu0 %v2083
      %v2338 = vpop.f32.mrf.mxu0
      %v2339 = vadd.f32 %v1978, %v2338
      %v2340 = vpop.f32.mrf.mxu0
      %v2341 = vadd.f32 %v1978, %v2340
      %2342 = vmatmul.bf16.gmra.mxu0 %v2086
      %v2343 = vpop.f32.mrf.mxu0
      %v2344 = vadd.f32 %v1978, %v2343
      %v2345 = vpop.f32.mrf.mxu0
      %v2346 = vadd.f32 %v1978, %v2345
      %2347 = vmatmul.bf16.gmra.mxu0 %v2089
      %v2348 = vpop.f32.mrf.mxu0
      %v2349 = vadd.f32 %v1978, %v2348
      %v2350 = vpop.f32.mrf.mxu0
      %v2351 = vadd.f32 %v1978, %v2350
      %2352 = vmatmul.bf16.gmra.mxu0 %v2092
      %v2353 = vpop.f32.mrf.mxu0
      %v2354 = vadd.f32 %v1978, %v2353
      %v2355 = vpop.f32.mrf.mxu0
      %v2356 = vadd.f32 %v1978, %v2355
      %2357 = vmatmul.bf16.gmra.mxu0 %v2095
      %v2358 = vpop.f32.mrf.mxu0
      %v2359 = vadd.f32 %v1978, %v2358
      %v2360 = vpop.f32.mrf.mxu0
      %v2361 = vadd.f32 %v1978, %v2360
      %2362 = vmatmul.bf16.gmra.mxu0 %v2098
      %v2363 = vpop.f32.mrf.mxu0
      %v2364 = vadd.f32 %v1978, %v2363
      %v2365 = vpop.f32.mrf.mxu0
      %v2366 = vadd.f32 %v1978, %v2365
      %2367 = vmatmul.bf16.gmra.mxu0 %v2101
      %v2368 = vpop.f32.mrf.mxu0
      %v2369 = vadd.f32 %v1978, %v2368
      %v2370 = vpop.f32.mrf.mxu0
      %v2371 = vadd.f32 %v1978, %v2370
      %2372 = vmatmul.bf16.gmra.mxu0 %v2104
      %v2373 = vpop.f32.mrf.mxu0
      %v2374 = vadd.f32 %v1978, %v2373
      %v2375 = vpop.f32.mrf.mxu0
      %v2376 = vadd.f32 %v1978, %v2375
      %2377 = vmatmul.bf16.gmra.mxu0 %v2107
      %v2378 = vpop.f32.mrf.mxu0
      %v2379 = vadd.f32 %v1978, %v2378
      %v2380 = vpop.f32.mrf.mxu0
      %v2381 = vadd.f32 %v1978, %v2380
      %2382 = vmatmul.bf16.gmra.mxu0 %v2110
      %v2383 = vpop.f32.mrf.mxu0
      %v2384 = vadd.f32 %v1978, %v2383
      %v2385 = vpop.f32.mrf.mxu0
      %v2386 = vadd.f32 %v1978, %v2385
      %2387 = vmatmul.bf16.gmra.mxu0 %v2113
      %v2388 = vpop.f32.mrf.mxu0
      %v2389 = vadd.f32 %v1978, %v2388
      %v2390 = vpop.f32.mrf.mxu0
      %v2391 = vadd.f32 %v1978, %v2390
      %2392 = vmatmul.bf16.gmra.mxu0 %v2116
      %v2393 = vpop.f32.mrf.mxu0
      %v2394 = vadd.f32 %v1978, %v2393
      %v2395 = vpop.f32.mrf.mxu0
      %v2396 = vadd.f32 %v1978, %v2395
      %2397 = vmatmul.bf16.gmra.mxu0 %v2119
      %v2398 = vpop.f32.mrf.mxu0
      %v2399 = vadd.f32 %v1978, %v2398
      %v2400 = vpop.f32.mrf.mxu0
      %v2401 = vadd.f32 %v1978, %v2400
      %2402 = vmatmul.bf16.gmra.mxu0 %v2122
      %v2403 = vpop.f32.mrf.mxu0
      %v2404 = vadd.f32 %v1978, %v2403
      %v2405 = vpop.f32.mrf.mxu0
      %v2406 = vadd.f32 %v1978, %v2405
      %2407 = vmatmul.bf16.gmra.mxu0 %v2125
      %v2408 = vpop.f32.mrf.mxu0
      %v2409 = vadd.f32 %v1978, %v2408
      %v2410 = vpop.f32.mrf.mxu0
      %v2411 = vadd.f32 %v1978, %v2410
      %2412 = vmatmul.bf16.gmra.mxu0 %v2128
      %v2413 = vpop.f32.mrf.mxu0
      %v2414 = vadd.f32 %v1978, %v2413
      %v2415 = vpop.f32.mrf.mxu0
      %v2416 = vadd.f32 %v1978, %v2415
      %2417 = vmatmul.bf16.gmra.mxu0 %v2131
      %v2418 = vpop.f32.mrf.mxu0
      %v2419 = vadd.f32 %v1978, %v2418
      %v2420 = vpop.f32.mrf.mxu0
      %v2421 = vadd.f32 %v1978, %v2420
      %2422 = vmatmul.bf16.gmra.mxu0 %v2134
      %v2423 = vpop.f32.mrf.mxu0
      %v2424 = vadd.f32 %v1978, %v2423
      %v2425 = vpop.f32.mrf.mxu0
      %v2426 = vadd.f32 %v1978, %v2425
      %2427 = vmatmul.bf16.gmra.mxu0 %v2137
      %v2428 = vpop.f32.mrf.mxu0
      %v2429 = vadd.f32 %v1978, %v2428
      %v2430 = vpop.f32.mrf.mxu0
      %v2431 = vadd.f32 %v1978, %v2430
      %2432 = vmatmul.bf16.gmra.mxu0 %v2140
      %v2433 = vpop.f32.mrf.mxu0
      %v2434 = vadd.f32 %v1978, %v2433
      %v2435 = vpop.f32.mrf.mxu0
      %v2436 = vadd.f32 %v1978, %v2435
      %2437 = vmatmul.bf16.gmra.mxu0 %v2143
      %v2438 = vpop.f32.mrf.mxu0
      %v2439 = vadd.f32 %v1978, %v2438
      %v2440 = vpop.f32.mrf.mxu0
      %v2441 = vadd.f32 %v1978, %v2440
      %2442 = vmatmul.bf16.gmra.mxu0 %v2146
      %v2443 = vpop.f32.mrf.mxu0
      %v2444 = vadd.f32 %v1978, %v2443
      %v2445 = vpop.f32.mrf.mxu0
      %v2446 = vadd.f32 %v1978, %v2445
      %2447 = vmatmul.bf16.gmra.mxu0 %v2149
      %v2448 = vpop.f32.mrf.mxu0
      %v2449 = vadd.f32 %v1978, %v2448
      %v2450 = vpop.f32.mrf.mxu0
      %v2451 = vadd.f32 %v1978, %v2450
      %2452 = vmatmul.bf16.gmra.mxu0 %v2152
      %v2453 = vpop.f32.mrf.mxu0
      %v2454 = vadd.f32 %v1978, %v2453
      %v2455 = vpop.f32.mrf.mxu0
      %v2456 = vadd.f32 %v1978, %v2455
      %2457 = vmatmul.bf16.gmra.mxu0 %v2155
      %v2458 = vpop.f32.mrf.mxu0
      %v2459 = vadd.f32 %v1978, %v2458
      %v2460 = vpop.f32.mrf.mxu0
      %v2461 = vadd.f32 %v1978, %v2460
      %2462 = vmatmul.bf16.gmra.mxu0 %v2158
      %v2463 = vpop.f32.mrf.mxu0
      %v2464 = vadd.f32 %v1978, %v2463
      %v2465 = vpop.f32.mrf.mxu0
      %v2466 = vadd.f32 %v1978, %v2465
      %2467 = vmatmul.bf16.gmra.mxu0 %v2161
      %v2468 = vpop.f32.mrf.mxu0
      %v2469 = vadd.f32 %v1978, %v2468
      %v2470 = vpop.f32.mrf.mxu0
      %v2471 = vadd.f32 %v1978, %v2470
      %2472 = vmatmul.bf16.gmra.mxu0 %v2164
      %v2473 = vpop.f32.mrf.mxu0
      %v2474 = vadd.f32 %v1978, %v2473
      %v2475 = vpop.f32.mrf.mxu0
      %v2476 = vadd.f32 %v1978, %v2475
      %2477 = vmatmul.bf16.gmra.mxu0 %v2167
      %v2478 = vpop.f32.mrf.mxu0
      %v2479 = vadd.f32 %v1978, %v2478
      %v2480 = vpop.f32.mrf.mxu0
      %v2481 = vadd.f32 %v1978, %v2480
      %2482 = vmatmul.bf16.gmra.mxu0 %v2170
      %v2483 = vpop.f32.mrf.mxu0
      %v2484 = vadd.f32 %v1978, %v2483
      %v2485 = vpop.f32.mrf.mxu0
      %v2486 = vadd.f32 %v1978, %v2485
      %2487 = vmatmul.bf16.gmra.mxu0 %v2173
      %v2488 = vpop.f32.mrf.mxu0
      %v2489 = vadd.f32 %v1978, %v2488
      %v2490 = vpop.f32.mrf.mxu0
      %v2491 = vadd.f32 %v1978, %v2490
      %2492 = vmatmul.bf16.gmra.mxu0 %v2176
      %v2493 = vpop.f32.mrf.mxu0
      %v2494 = vadd.f32 %v1978, %v2493
      %v2495 = vpop.f32.mrf.mxu0
      %v2496 = vadd.f32 %v1978, %v2495
      %2497 = vmatmul.bf16.gmra.mxu0 %v2179
      %v2498 = vpop.f32.mrf.mxu0
      %v2499 = vadd.f32 %v1978, %v2498
      %v2500 = vpop.f32.mrf.mxu0
      %v2501 = vadd.f32 %v1978, %v2500
      %2502 = vmatmul.bf16.gmra.mxu0 %v2182
      %v2503 = vpop.f32.mrf.mxu0
      %v2504 = vadd.f32 %v1978, %v2503
      %v2505 = vpop.f32.mrf.mxu0
      %v2506 = vadd.f32 %v1978, %v2505
      %2507 = vmatmul.bf16.gmra.mxu0 %v2185
      %v2508 = vpop.f32.mrf.mxu0
      %v2509 = vadd.f32 %v1978, %v2508
      %v2510 = vpop.f32.mrf.mxu0
      %v2511 = vadd.f32 %v1978, %v2510
      %2512 = vmatmul.bf16.gmra.mxu0 %v2188
      %v2513 = vpop.f32.mrf.mxu0
      %v2514 = vadd.f32 %v1978, %v2513
      %v2515 = vpop.f32.mrf.mxu0
      %v2516 = vadd.f32 %v1978, %v2515
      %2517 = vmatmul.bf16.gmra.mxu0 %v2191
      %v2518 = vpop.f32.mrf.mxu0
      %v2519 = vadd.f32 %v1978, %v2518
      %v2520 = vpop.f32.mrf.mxu0
      %v2521 = vadd.f32 %v1978, %v2520
      %2522 = vmatmul.bf16.gmra.mxu0 %v2194
      %v2523 = vpop.f32.mrf.mxu0
      %v2524 = vadd.f32 %v1978, %v2523
      %v2525 = vpop.f32.mrf.mxu0
      %v2526 = vadd.f32 %v1978, %v2525
      %2527 = vmatmul.bf16.gmra.mxu0 %v2197
      %v2528 = vpop.f32.mrf.mxu0
      %v2529 = vadd.f32 %v1978, %v2528
      %v2530 = vpop.f32.mrf.mxu0
      %2531 = vdwg.mxu0
      %2532 = vst.msk [vmem:[%s280] sm:$0xff] %vm482, %v2209
      %2533 = vst.msk [vmem:[%s280 + $0x8] sm:$0xff] %vm482, %v2211
      %2534 = vst.msk [vmem:[%s280 + $0x10] sm:$0xff] %vm482, %v2214
      %2535 = vst.msk [vmem:[%s280 + $0x18] sm:$0xff] %vm482, %v2216
      %2536 = vst.msk [vmem:[%s280 + $0x20] sm:$0xff] %vm482, %v2219
      %2537 = vst.msk [vmem:[%s280 + $0x28] sm:$0xff] %vm482, %v2221
      %2538 = vst.msk [vmem:[%s280 + $0x30] sm:$0xff] %vm482, %v2224
      %2539 = vst.msk [vmem:[%s280 + $0x38] sm:$0xff] %vm482, %v2226
      %2540 = vst.msk [vmem:[%s280 + $0x40] sm:$0xff] %vm482, %v2229
      %2541 = vst.msk [vmem:[%s280 + $0x48] sm:$0xff] %vm482, %v2231
      %2542 = vst.msk [vmem:[%s280 + $0x50] sm:$0xff] %vm482, %v2234
      %2543 = vst.msk [vmem:[%s280 + $0x58] sm:$0xff] %vm482, %v2236
      %2544 = vst.msk [vmem:[%s280 + $0x60] sm:$0xff] %vm482, %v2239
      %2545 = vst.msk [vmem:[%s280 + $0x68] sm:$0xff] %vm482, %v2241
      %2546 = vst.msk [vmem:[%s280 + $0x70] sm:$0xff] %vm482, %v2244
      %2547 = vst.msk [vmem:[%s280 + $0x78] sm:$0xff] %vm482, %v2246
      %2548 = vst.msk [vmem:[%s280 + $0x80] sm:$0xff] %vm482, %v2249
      %2549 = vst.msk [vmem:[%s280 + $0x88] sm:$0xff] %vm482, %v2251
      %2550 = vst.msk [vmem:[%s280 + $0x90] sm:$0xff] %vm482, %v2254
      %2551 = vst.msk [vmem:[%s280 + $0x98] sm:$0xff] %vm482, %v2256
      %2552 = vst.msk [vmem:[%s280 + $0xa0] sm:$0xff] %vm482, %v2259
      %2553 = vst.msk [vmem:[%s280 + $0xa8] sm:$0xff] %vm482, %v2261
      %2554 = vst.msk [vmem:[%s280 + $0xb0] sm:$0xff] %vm482, %v2264
      %2555 = vst.msk [vmem:[%s280 + $0xb8] sm:$0xff] %vm482, %v2266
      %2556 = vst.msk [vmem:[%s280 + $0xc0] sm:$0xff] %vm482, %v2269
      %2557 = vst.msk [vmem:[%s280 + $0xc8] sm:$0xff] %vm482, %v2271
      %2558 = vst.msk [vmem:[%s280 + $0xd0] sm:$0xff] %vm482, %v2274
      %2559 = vst.msk [vmem:[%s280 + $0xd8] sm:$0xff] %vm482, %v2276
      %2560 = vst.msk [vmem:[%s280 + $0xe0] sm:$0xff] %vm482, %v2279
      %2561 = vst.msk [vmem:[%s280 + $0xe8] sm:$0xff] %vm482, %v2281
      %2562 = vst.msk [vmem:[%s280 + $0xf0] sm:$0xff] %vm482, %v2284
      %2563 = vst.msk [vmem:[%s280 + $0xf8] sm:$0xff] %vm482, %v2286
      %2564 = vst.msk [vmem:[%s280 + $0x100] sm:$0xff] %vm482, %v2289
      %2565 = vst.msk [vmem:[%s280 + $0x108] sm:$0xff] %vm482, %v2291
      %2566 = vst.msk [vmem:[%s280 + $0x110] sm:$0xff] %vm482, %v2294
      %2567 = vst.msk [vmem:[%s280 + $0x118] sm:$0xff] %vm482, %v2296
      %2568 = vst.msk [vmem:[%s280 + $0x120] sm:$0xff] %vm482, %v2299
      %2569 = vst.msk [vmem:[%s280 + $0x128] sm:$0xff] %vm482, %v2301
      %2570 = vst.msk [vmem:[%s280 + $0x130] sm:$0xff] %vm482, %v2304
      %2571 = vst.msk [vmem:[%s280 + $0x138] sm:$0xff] %vm482, %v2306
      %2572 = vst.msk [vmem:[%s280 + $0x140] sm:$0xff] %vm482, %v2309
      %2573 = vst.msk [vmem:[%s280 + $0x148] sm:$0xff] %vm482, %v2311
      %2574 = vst.msk [vmem:[%s280 + $0x150] sm:$0xff] %vm482, %v2314
      %2575 = vst.msk [vmem:[%s280 + $0x158] sm:$0xff] %vm482, %v2316
      %2576 = vst.msk [vmem:[%s280 + $0x160] sm:$0xff] %vm482, %v2319
      %2577 = vst.msk [vmem:[%s280 + $0x168] sm:$0xff] %vm482, %v2321
      %2578 = vst.msk [vmem:[%s280 + $0x170] sm:$0xff] %vm482, %v2324
      %2579 = vst.msk [vmem:[%s280 + $0x178] sm:$0xff] %vm482, %v2326
      %2580 = vst.msk [vmem:[%s280 + $0x180] sm:$0xff] %vm482, %v2329
      %2581 = vst.msk [vmem:[%s280 + $0x188] sm:$0xff] %vm482, %v2331
      %2582 = vst.msk [vmem:[%s280 + $0x190] sm:$0xff] %vm482, %v2334
      %2583 = vst.msk [vmem:[%s280 + $0x198] sm:$0xff] %vm482, %v2336
      %2584 = vst.msk [vmem:[%s280 + $0x1a0] sm:$0xff] %vm482, %v2339
      %2585 = vst.msk [vmem:[%s280 + $0x1a8] sm:$0xff] %vm482, %v2341
      %2586 = vst.msk [vmem:[%s280 + $0x1b0] sm:$0xff] %vm482, %v2344
      %2587 = vst.msk [vmem:[%s280 + $0x1b8] sm:$0xff] %vm482, %v2346
      %2588 = vst.msk [vmem:[%s280 + $0x1c0] sm:$0xff] %vm482, %v2349
      %2589 = vst.msk [vmem:[%s280 + $0x1c8] sm:$0xff] %vm482, %v2351
      %2590 = vst.msk [vmem:[%s280 + $0x1d0] sm:$0xff] %vm482, %v2354
      %2591 = vst.msk [vmem:[%s280 + $0x1d8] sm:$0xff] %vm482, %v2356
      %2592 = vst.msk [vmem:[%s280 + $0x1e0] sm:$0xff] %vm482, %v2359
      %2593 = vst.msk [vmem:[%s280 + $0x1e8] sm:$0xff] %vm482, %v2361
      %2594 = vst.msk [vmem:[%s280 + $0x1f0] sm:$0xff] %vm482, %v2364
      %2595 = vst.msk [vmem:[%s280 + $0x1f8] sm:$0xff] %vm482, %v2366
      %2596 = vst.msk [vmem:[%s280 + $0x200] sm:$0xff] %vm482, %v2369
      %2597 = vst.msk [vmem:[%s280 + $0x208] sm:$0xff] %vm482, %v2371
      %2598 = vst.msk [vmem:[%s280 + $0x210] sm:$0xff] %vm482, %v2374
      %2599 = vst.msk [vmem:[%s280 + $0x218] sm:$0xff] %vm482, %v2376
      %2600 = vst.msk [vmem:[%s280 + $0x220] sm:$0xff] %vm482, %v2379
      %2601 = vst.msk [vmem:[%s280 + $0x228] sm:$0xff] %vm482, %v2381
      %2602 = vst.msk [vmem:[%s280 + $0x230] sm:$0xff] %vm482, %v2384
      %2603 = vst.msk [vmem:[%s280 + $0x238] sm:$0xff] %vm482, %v2386
      %2604 = vst.msk [vmem:[%s280 + $0x240] sm:$0xff] %vm482, %v2389
      %2605 = vst.msk [vmem:[%s280 + $0x248] sm:$0xff] %vm482, %v2391
      %2606 = vst.msk [vmem:[%s280 + $0x250] sm:$0xff] %vm482, %v2394
      %2607 = vst.msk [vmem:[%s280 + $0x258] sm:$0xff] %vm482, %v2396
      %2608 = vst.msk [vmem:[%s280 + $0x260] sm:$0xff] %vm482, %v2399
      %2609 = vst.msk [vmem:[%s280 + $0x268] sm:$0xff] %vm482, %v2401
      %2610 = vst.msk [vmem:[%s280 + $0x270] sm:$0xff] %vm482, %v2404
      %2611 = vst.msk [vmem:[%s280 + $0x278] sm:$0xff] %vm482, %v2406
      %2612 = vst.msk [vmem:[%s280 + $0x280] sm:$0xff] %vm482, %v2409
      %2613 = vst.msk [vmem:[%s280 + $0x288] sm:$0xff] %vm482, %v2411
      %2614 = vst.msk [vmem:[%s280 + $0x290] sm:$0xff] %vm482, %v2414
      %2615 = vst.msk [vmem:[%s280 + $0x298] sm:$0xff] %vm482, %v2416
      %2616 = vst.msk [vmem:[%s280 + $0x2a0] sm:$0xff] %vm482, %v2419
      %2617 = vst.msk [vmem:[%s280 + $0x2a8] sm:$0xff] %vm482, %v2421
      %2618 = vst.msk [vmem:[%s280 + $0x2b0] sm:$0xff] %vm482, %v2424
      %2619 = vst.msk [vmem:[%s280 + $0x2b8] sm:$0xff] %vm482, %v2426
      %2620 = vst.msk [vmem:[%s280 + $0x2c0] sm:$0xff] %vm482, %v2429
      %2621 = vst.msk [vmem:[%s280 + $0x2c8] sm:$0xff] %vm482, %v2431
      %2622 = vst.msk [vmem:[%s280 + $0x2d0] sm:$0xff] %vm482, %v2434
      %2623 = vst.msk [vmem:[%s280 + $0x2d8] sm:$0xff] %vm482, %v2436
      %2624 = vst.msk [vmem:[%s280 + $0x2e0] sm:$0xff] %vm482, %v2439
      %2625 = vst.msk [vmem:[%s280 + $0x2e8] sm:$0xff] %vm482, %v2441
      %2626 = vst.msk [vmem:[%s280 + $0x2f0] sm:$0xff] %vm482, %v2444
      %2627 = vst.msk [vmem:[%s280 + $0x2f8] sm:$0xff] %vm482, %v2446
      %2628 = vst.msk [vmem:[%s280 + $0x300] sm:$0xff] %vm482, %v2449
      %2629 = vst.msk [vmem:[%s280 + $0x308] sm:$0xff] %vm482, %v2451
      %2630 = vst.msk [vmem:[%s280 + $0x310] sm:$0xff] %vm482, %v2454
      %2631 = vst.msk [vmem:[%s280 + $0x318] sm:$0xff] %vm482, %v2456
      %2632 = vst.msk [vmem:[%s280 + $0x320] sm:$0xff] %vm482, %v2459
      %2633 = vst.msk [vmem:[%s280 + $0x328] sm:$0xff] %vm482, %v2461
      %2634 = vst.msk [vmem:[%s280 + $0x330] sm:$0xff] %vm482, %v2464
      %2635 = vst.msk [vmem:[%s280 + $0x338] sm:$0xff] %vm482, %v2466
      %2636 = vst.msk [vmem:[%s280 + $0x340] sm:$0xff] %vm482, %v2469
      %2637 = vst.msk [vmem:[%s280 + $0x348] sm:$0xff] %vm482, %v2471
      %2638 = vst.msk [vmem:[%s280 + $0x350] sm:$0xff] %vm482, %v2474
      %2639 = vst.msk [vmem:[%s280 + $0x358] sm:$0xff] %vm482, %v2476
      %2640 = vst.msk [vmem:[%s280 + $0x360] sm:$0xff] %vm482, %v2479
      %2641 = vst.msk [vmem:[%s280 + $0x368] sm:$0xff] %vm482, %v2481
      %2642 = vst.msk [vmem:[%s280 + $0x370] sm:$0xff] %vm482, %v2484
      %2643 = vst.msk [vmem:[%s280 + $0x378] sm:$0xff] %vm482, %v2486
      %2644 = vst.msk [vmem:[%s280 + $0x380] sm:$0xff] %vm482, %v2489
      %2645 = vst.msk [vmem:[%s280 + $0x388] sm:$0xff] %vm482, %v2491
      %2646 = vst.msk [vmem:[%s280 + $0x390] sm:$0xff] %vm482, %v2494
      %2647 = vst.msk [vmem:[%s280 + $0x398] sm:$0xff] %vm482, %v2496
      %2648 = vst.msk [vmem:[%s280 + $0x3a0] sm:$0xff] %vm482, %v2499
      %2649 = vst.msk [vmem:[%s280 + $0x3a8] sm:$0xff] %vm482, %v2501
      %2650 = vst.msk [vmem:[%s280 + $0x3b0] sm:$0xff] %vm482, %v2504
      %2651 = vst.msk [vmem:[%s280 + $0x3b8] sm:$0xff] %vm482, %v2506
      %2652 = vst.msk [vmem:[%s280 + $0x3c0] sm:$0xff] %vm482, %v2509
      %2653 = vst.msk [vmem:[%s280 + $0x3c8] sm:$0xff] %vm482, %v2511
      %2654 = vst.msk [vmem:[%s280 + $0x3d0] sm:$0xff] %vm482, %v2514
      %2655 = vst.msk [vmem:[%s280 + $0x3d8] sm:$0xff] %vm482, %v2516
      %2656 = vst.msk [vmem:[%s280 + $0x3e0] sm:$0xff] %vm482, %v2519
      %2657 = vst.msk [vmem:[%s280 + $0x3e8] sm:$0xff] %vm482, %v2521
      %2658 = vst.msk [vmem:[%s280 + $0x3f0] sm:$0xff] %vm482, %v2524
      %2659 = vst.msk [vmem:[%s280 + $0x3f8] sm:$0xff] %vm482, %v2526
      %2660 = vst.msk [vmem:[%s280 + $0x400] sm:$0xff] %vm482, %v2529
      %s2661 = smul.u32 129, %s18
      %p2662 = scmp.lt.s32.totalorder %s2661, 257
      %s2663 = scalar_select %p2662, %s2661, 257
      %s2664 = smul.addr %s2663, 8
      %s2665 = scalar_lea.vmem %s7, %s2664
      // Predicated region
      $region49: #{tpu_custom_call.1} parent=47 // pred_check
        %p2666 = pneg %p188
      $region50: #{tpu_custom_call.1} parent=47 // pred_check_branch
        %2668 = sbr.rel (%p2666) target = $region52
      $region51: #{tpu_custom_call.1} parent=47 // pred_region
        %s2669 = smul.u32 129, %s18
      $region52: #{tpu_custom_call.1} parent=47 // pred_fallthru
        _
    $region48: #{tpu_custom_call.1} parent=5 // pred_fallthru
      _
    %p2670 = scmp.le.s32.totalorder 2, %s13
    // Predicated region
    $region53: #{tpu_custom_call.1} parent=5 // pred_check
      %p2671 = pneg %p2670
    $region54: #{tpu_custom_call.1} parent=5 // pred_check_branch
      %2673 = sbr.rel (%p2671) target = $region56
    $region55: #{tpu_custom_call.1} parent=5 // pred_region
      %s2674 = ssub.s32 %s13, 2
      // Predicated region
      $region57: #{tpu_custom_call.1} parent=55 // pred_check
        %p2675 = pneg %p194
      $region58: #{tpu_custom_call.1} parent=55 // pred_check_branch
        %2677 = sbr.rel (%p2675) target = $region60
      $region59: #{tpu_custom_call.1} parent=55 // pred_region
        %s2678 = smul.u32 129, %s19
        %p2679 = scmp.lt.s32.totalorder %s2678, 257
        %s2680 = scalar_select %p2679, %s2678, 257
        %s2681 = smul.addr %s2680, 8
        %s2682 = scalar_lea.vmem %s7, %s2681
      $region60: #{tpu_custom_call.1} parent=55 // pred_fallthru
        _
    $region56: #{tpu_custom_call.1} parent=5 // pred_fallthru
      _
  $region6: #{tpu_custom_call.1} parent=0 // loop_footer
    %s17 = sadd.s32 1, %s13
  $region7: #{tpu_custom_call.1} parent=0 // loop_footer_branch
    %12 = sbr.rel target = $region3
  $region8: #{tpu_custom_call.1} parent=0 // loop_exit
    _

</llo_original>
